<compile_context>
chip_gen: v7x
topology: tpu7x:2x2x1
jax: 0.10.0
libtpu: 0.0.40
codegen_flags: <defaults>
</compile_context>

<pallas_src>
import functools

import jax
import jax.numpy as jnp
import numpy as np
from jax import lax
from jax.experimental import pallas as pl
from jax.experimental.pallas import tpu as pltpu


def _fused_lstm_classifier_kernel(ids_ref, table_ref, wih_ref, whh_ref, b_ref,
                                  wc_ref, bc_ref, out_ref, gin_scr, hs_scr,
                                  *, T, B, H, V):
    TB = T * B

    # 1) Embedding gather fused as a one-hot matmul (exact row selection).
    ids = ids_ref[...]                                              # (TB, 1) int32
    iota = lax.broadcasted_iota(jnp.int32, (TB, V), 1)              # (TB, V)
    onehot = jnp.where(iota == ids, 1.0, 0.0).astype(jnp.float32)   # (TB, V)
    emb = jnp.dot(onehot, table_ref[...],
                  preferred_element_type=jnp.float32)               # (TB, E)

    # 2) Hoisted input projection for ALL time steps + fused LSTM biases.
    #    gin[t*B:(t+1)*B] = x_t @ W_ih^T + (b_ih + b_hh)
    gin_scr[...] = (jnp.dot(emb, wih_ref[...],
                            preferred_element_type=jnp.float32)
                    + b_ref[...])                                   # (TB, 4H)

    # 3) Recurrence: only the h-projection stays on the serial path.
    whh = whh_ref[...]                                              # (H, 4H)
    h = jnp.zeros((B, H), jnp.float32)
    c = jnp.zeros((B, H), jnp.float32)
    for t in range(T):                                              # static unroll (T small)
        gates = (gin_scr[t * B:(t + 1) * B, :]
                 + jnp.dot(h, whh, preferred_element_type=jnp.float32))  # (B, 4H)
        i_g = jax.nn.sigmoid(gates[:, 0 * H:1 * H])
        f_g = jax.nn.sigmoid(gates[:, 1 * H:2 * H])
        g_g = jnp.tanh(gates[:, 2 * H:3 * H])
        o_g = jax.nn.sigmoid(gates[:, 3 * H:4 * H])
        c = f_g * c + i_g * g_g
        h = o_g * jnp.tanh(c)
        hs_scr[t * B:(t + 1) * B, :] = h

    # 4) Hoisted classifier: one matmul + bias over all (T*B) hidden states,
    #    single store of the whole output.
    logits = (jnp.dot(hs_scr[...], wc_ref[...],
                      preferred_element_type=jnp.float32)
              + bc_ref[...])                                        # (TB, C)
    out_ref[...] = logits.astype(out_ref.dtype)


def baseline_model_forward(x_ids, x_lengths, params):
    """x_ids: (T, B) int32; returns logits (T, B, num_classes) float32."""
    del x_lengths  # pack_padded_sequence result is unused in the reference forward

    emb_table = jnp.asarray(params["embedding"], jnp.float32)  # (V, E)
    w_ih = jnp.asarray(params["w_ih"], jnp.float32)            # (4H, E)
    w_hh = jnp.asarray(params["w_hh"], jnp.float32)            # (4H, H)
    b_ih = jnp.asarray(params["b_ih"], jnp.float32)            # (4H,)
    b_hh = jnp.asarray(params["b_hh"], jnp.float32)            # (4H,)
    w_c = jnp.asarray(params["w_c"], jnp.float32)              # (C, H)
    b_c = jnp.asarray(params["b_c"], jnp.float32)              # (C,)

    T, B = x_ids.shape
    V, E = emb_table.shape
    H = w_hh.shape[1]
    C = w_c.shape[0]
    TB = T * B

    ids2d = x_ids.astype(jnp.int32).reshape(TB, 1)   # row-major: (t, b) ordering
    wih_t = w_ih.T                                   # (E, 4H)
    whh_t = w_hh.T                                   # (H, 4H)
    b = (b_ih + b_hh).reshape(1, 4 * H)              # folded LSTM bias
    wc_t = w_c.T                                     # (H, C)
    bc = b_c.reshape(1, C)

    kernel = functools.partial(_fused_lstm_classifier_kernel, T=T, B=B, H=H, V=V)
    vmem = pl.BlockSpec(memory_space=pltpu.MemorySpace.VMEM)

    out_flat = pl.pallas_call(
        kernel,
        out_shape=jax.ShapeDtypeStruct((TB, C), jnp.float32),
        in_specs=[vmem] * 7,          # whole arrays resident in VMEM, single launch
        out_specs=vmem,
        scratch_shapes=[
            pltpu.VMEM((TB, 4 * H), jnp.float32),   # hoisted input-projection gates
            pltpu.VMEM((TB, H), jnp.float32),       # all hidden states h_t
        ],
    )(ids2d, emb_table, wih_t, whh_t, b, wc_t, bc)

    return out_flat.reshape(T, B, C)


def _reference_forward(x_ids, params):
    """Pure-JAX reference (lax.scan LSTM) for correctness checking."""
    emb = params["embedding"][x_ids].astype(jnp.float32)   # (T, B, E)
    H = params["w_hh"].shape[1]
    B = x_ids.shape[1]
    wih_t = params["w_ih"].T
    whh_t = params["w_hh"].T
    b = params["b_ih"] + params["b_hh"]

    def step(carry, x_t):
        h, c = carry
        gates = x_t @ wih_t + h @ whh_t + b
        i_g = jax.nn.sigmoid(gates[:, 0 * H:1 * H])
        f_g = jax.nn.sigmoid(gates[:, 1 * H:2 * H])
        g_g = jnp.tanh(gates[:, 2 * H:3 * H])
        o_g = jax.nn.sigmoid(gates[:, 3 * H:4 * H])
        c_new = f_g * c + i_g * g_g
        h_new = o_g * jnp.tanh(c_new)
        return (h_new, c_new), h_new

    init = (jnp.zeros((B, H), jnp.float32), jnp.zeros((B, H), jnp.float32))
    _, hs = lax.scan(step, init, emb)                       # (T, B, H)
    return hs @ params["w_c"].T + params["b_c"]             # (T, B, C)


if __name__ == "__main__":
    # hparams: vocab_size=50, embedding_dim=32, hidden_dim=32, num_classes=8,
    #          num_layers=1, bidirectional=False, dropout=0.0
    V, E, H, C = 50, 32, 32, 8
    T, B = 8, 2

    key = jax.random.PRNGKey(0)
    keys = jax.random.split(key, 8)
    params = {
        "embedding": jax.random.normal(keys[0], (V, E), jnp.float32) * 0.1,
        "w_ih": jax.random.normal(keys[1], (4 * H, E), jnp.float32) * 0.1,
        "w_hh": jax.random.normal(keys[2], (4 * H, H), jnp.float32) * 0.1,
        "b_ih": jax.random.normal(keys[3], (4 * H,), jnp.float32) * 0.1,
        "b_hh": jax.random.normal(keys[4], (4 * H,), jnp.float32) * 0.1,
        "w_c": jax.random.normal(keys[5], (C, H), jnp.float32) * 0.1,
        "b_c": jax.random.normal(keys[6], (C,), jnp.float32) * 0.1,
    }

    x_ids = jax.random.randint(keys[7], (T, B), 0, V, dtype=jnp.int32)
    x_lengths = jnp.full((B,), T, dtype=jnp.int32)

    out = baseline_model_forward(x_ids, x_lengths, params)
    out = jax.block_until_ready(out)

    ref = jax.block_until_ready(_reference_forward(x_ids, params))
    np.testing.assert_allclose(np.asarray(out), np.asarray(ref),
                               rtol=1e-4, atol=1e-4)
    assert out.shape == (T, B, C)
    print("KERNEL_OK")
</pallas_src>

<mosaic_0001>
module attributes {stable_mosaic.version = 11 : i64} {
  func.func @_fused_lstm_classifier_kernel(%arg0: memref<16x1xi32, #tpu.memory_space<vmem>>, %arg1: memref<50x32xf32, #tpu.memory_space<vmem>>, %arg2: memref<32x128xf32, #tpu.memory_space<vmem>>, %arg3: memref<32x128xf32, #tpu.memory_space<vmem>>, %arg4: memref<1x128xf32, #tpu.memory_space<vmem>>, %arg5: memref<32x8xf32, #tpu.memory_space<vmem>>, %arg6: memref<1x8xf32, #tpu.memory_space<vmem>>, %arg7: memref<16x8xf32, #tpu.memory_space<vmem>>, %arg8: memref<16x128xf32, #tpu.memory_space<vmem>>, %arg9: memref<16x32xf32, #tpu.memory_space<vmem>>) attributes {dimension_semantics = [], scalar_prefetch = 0 : i64, scratch_operands = 2 : i64, tpu.core_type = #tpu.core_type<tc>} {
    %c0 = arith.constant 0 : index
    %c0_0 = arith.constant 0 : index
    %0 = vector.load %arg0[%c0, %c0_0] : memref<16x1xi32, #tpu.memory_space<vmem>>, vector<16x1xi32>
    %1 = tpu.iota {dimensions = array<i32: 1>} : vector<16x50xi32>
    %2 = vector.broadcast %0 : vector<16x1xi32> to vector<16x50xi32>
    %3 = arith.cmpi eq, %1, %2 : vector<16x50xi32>
    %cst = arith.constant 1.000000e+00 : f32
    %cst_1 = arith.constant 0.000000e+00 : f32
    %4 = vector.broadcast %cst : f32 to vector<16x50xf32>
    %5 = vector.broadcast %cst_1 : f32 to vector<16x50xf32>
    %6 = arith.select %3, %4, %5 : vector<16x50xi1>, vector<16x50xf32>
    %c0_2 = arith.constant 0 : index
    %c0_3 = arith.constant 0 : index
    %7 = vector.load %arg1[%c0_2, %c0_3] : memref<50x32xf32, #tpu.memory_space<vmem>>, vector<50x32xf32>
    %cst_4 = arith.constant dense<0.000000e+00> : vector<16x32xf32>
    %8 = tpu.matmul %6, %7, %cst_4 {dimension_numbers = #tpu.dot_dimension_numbers<[1], [0], [0], [1], [0, 0, 1, 1], [], []>} : vector<16x50xf32>, vector<50x32xf32>, vector<16x32xf32> -> vector<16x32xf32>
    %c0_5 = arith.constant 0 : index
    %c0_6 = arith.constant 0 : index
    %9 = vector.load %arg2[%c0_5, %c0_6] : memref<32x128xf32, #tpu.memory_space<vmem>>, vector<32x128xf32>
    %cst_7 = arith.constant dense<0.000000e+00> : vector<16x128xf32>
    %10 = tpu.matmul %8, %9, %cst_7 {dimension_numbers = #tpu.dot_dimension_numbers<[1], [0], [0], [1], [0, 0, 1, 1], [], []>} : vector<16x32xf32>, vector<32x128xf32>, vector<16x128xf32> -> vector<16x128xf32>
    %c0_8 = arith.constant 0 : index
    %c0_9 = arith.constant 0 : index
    %11 = vector.load %arg4[%c0_8, %c0_9] : memref<1x128xf32, #tpu.memory_space<vmem>>, vector<1x128xf32>
    %12 = vector.broadcast %11 : vector<1x128xf32> to vector<16x128xf32>
    %13 = arith.addf %10, %12 : vector<16x128xf32>
    %c0_10 = arith.constant 0 : index
    %c0_11 = arith.constant 0 : index
    %14 = vector.load %arg8[%c0_10, %c0_11] : memref<16x128xf32, #tpu.memory_space<vmem>>, vector<16x128xf32>
    tpu.vector_store %arg8[%c0_10, %c0_11], %13 {strides = array<i32>} : memref<16x128xf32, #tpu.memory_space<vmem>>, vector<16x128xf32>,
    %c0_12 = arith.constant 0 : index
    %c0_13 = arith.constant 0 : index
    %15 = vector.load %arg3[%c0_12, %c0_13] : memref<32x128xf32, #tpu.memory_space<vmem>>, vector<32x128xf32>
    %cst_14 = arith.constant 0.000000e+00 : f32
    %16 = vector.broadcast %cst_14 : f32 to vector<2x32xf32>
    %cst_15 = arith.constant 0.000000e+00 : f32
    %17 = vector.broadcast %cst_15 : f32 to vector<2x32xf32>
    %c0_16 = arith.constant 0 : index
    %c0_17 = arith.constant 0 : index
    %18 = vector.load %arg8[%c0_16, %c0_17] : memref<16x128xf32, #tpu.memory_space<vmem>>, vector<2x128xf32>
    %cst_18 = arith.constant dense<0.000000e+00> : vector<2x128xf32>
    %19 = tpu.matmul %16, %15, %cst_18 {dimension_numbers = #tpu.dot_dimension_numbers<[1], [0], [0], [1], [0, 0, 1, 1], [], []>} : vector<2x32xf32>, vector<32x128xf32>, vector<2x128xf32> -> vector<2x128xf32>
    %20 = arith.addf %18, %19 : vector<2x128xf32>
    %21 = vector.extract_strided_slice %20 {offsets = [0, 0], sizes = [2, 32], strides = [1, 1]} : vector<2x128xf32> to vector<2x32xf32>
    %22 = arith.negf %21 : vector<2x32xf32>
    %23 = math.exp %22 : vector<2x32xf32>
    %cst_19 = arith.constant 1.000000e+00 : f32
    %24 = vector.broadcast %cst_19 : f32 to vector<2x32xf32>
    %25 = arith.addf %24, %23 : vector<2x32xf32>
    %26 = arith.divf %24, %25 : vector<2x32xf32>
    %27 = vector.extract_strided_slice %20 {offsets = [0, 32], sizes = [2, 32], strides = [1, 1]} : vector<2x128xf32> to vector<2x32xf32>
    %28 = arith.negf %27 : vector<2x32xf32>
    %29 = math.exp %28 : vector<2x32xf32>
    %cst_20 = arith.constant 1.000000e+00 : f32
    %30 = vector.broadcast %cst_20 : f32 to vector<2x32xf32>
    %31 = arith.addf %30, %29 : vector<2x32xf32>
    %32 = arith.divf %30, %31 : vector<2x32xf32>
    %33 = vector.extract_strided_slice %20 {offsets = [0, 64], sizes = [2, 32], strides = [1, 1]} : vector<2x128xf32> to vector<2x32xf32>
    %34 = math.tanh %33 : vector<2x32xf32>
    %35 = vector.extract_strided_slice %20 {offsets = [0, 96], sizes = [2, 32], strides = [1, 1]} : vector<2x128xf32> to vector<2x32xf32>
    %36 = arith.negf %35 : vector<2x32xf32>
    %37 = math.exp %36 : vector<2x32xf32>
    %cst_21 = arith.constant 1.000000e+00 : f32
    %38 = vector.broadcast %cst_21 : f32 to vector<2x32xf32>
    %39 = arith.addf %38, %37 : vector<2x32xf32>
    %40 = arith.divf %38, %39 : vector<2x32xf32>
    %41 = arith.mulf %32, %17 : vector<2x32xf32>
    %42 = arith.mulf %26, %34 : vector<2x32xf32>
    %43 = arith.addf %41, %42 : vector<2x32xf32>
    %44 = math.tanh %43 : vector<2x32xf32>
    %45 = arith.mulf %40, %44 : vector<2x32xf32>
    %c0_22 = arith.constant 0 : index
    %c0_23 = arith.constant 0 : index
    %46 = vector.load %arg9[%c0_22, %c0_23] : memref<16x32xf32, #tpu.memory_space<vmem>>, vector<2x32xf32>
    tpu.vector_store %arg9[%c0_22, %c0_23], %45 {strides = array<i32>} : memref<16x32xf32, #tpu.memory_space<vmem>>, vector<2x32xf32>,
    %c2 = arith.constant 2 : index
    %c0_24 = arith.constant 0 : index
    %47 = vector.load %arg8[%c2, %c0_24] : memref<16x128xf32, #tpu.memory_space<vmem>>, vector<2x128xf32>
    %cst_25 = arith.constant dense<0.000000e+00> : vector<2x128xf32>
    %48 = tpu.matmul %45, %15, %cst_25 {dimension_numbers = #tpu.dot_dimension_numbers<[1], [0], [0], [1], [0, 0, 1, 1], [], []>} : vector<2x32xf32>, vector<32x128xf32>, vector<2x128xf32> -> vector<2x128xf32>
    %49 = arith.addf %47, %48 : vector<2x128xf32>
    %50 = vector.extract_strided_slice %49 {offsets = [0, 0], sizes = [2, 32], strides = [1, 1]} : vector<2x128xf32> to vector<2x32xf32>
    %51 = arith.negf %50 : vector<2x32xf32>
    %52 = math.exp %51 : vector<2x32xf32>
    %cst_26 = arith.constant 1.000000e+00 : f32
    %53 = vector.broadcast %cst_26 : f32 to vector<2x32xf32>
    %54 = arith.addf %53, %52 : vector<2x32xf32>
    %55 = arith.divf %53, %54 : vector<2x32xf32>
    %56 = vector.extract_strided_slice %49 {offsets = [0, 32], sizes = [2, 32], strides = [1, 1]} : vector<2x128xf32> to vector<2x32xf32>
    %57 = arith.negf %56 : vector<2x32xf32>
    %58 = math.exp %57 : vector<2x32xf32>
    %cst_27 = arith.constant 1.000000e+00 : f32
    %59 = vector.broadcast %cst_27 : f32 to vector<2x32xf32>
    %60 = arith.addf %59, %58 : vector<2x32xf32>
    %61 = arith.divf %59, %60 : vector<2x32xf32>
    %62 = vector.extract_strided_slice %49 {offsets = [0, 64], sizes = [2, 32], strides = [1, 1]} : vector<2x128xf32> to vector<2x32xf32>
    %63 = math.tanh %62 : vector<2x32xf32>
    %64 = vector.extract_strided_slice %49 {offsets = [0, 96], sizes = [2, 32], strides = [1, 1]} : vector<2x128xf32> to vector<2x32xf32>
    %65 = arith.negf %64 : vector<2x32xf32>
    %66 = math.exp %65 : vector<2x32xf32>
    %cst_28 = arith.constant 1.000000e+00 : f32
    %67 = vector.broadcast %cst_28 : f32 to vector<2x32xf32>
    %68 = arith.addf %67, %66 : vector<2x32xf32>
    %69 = arith.divf %67, %68 : vector<2x32xf32>
    %70 = arith.mulf %61, %43 : vector<2x32xf32>
    %71 = arith.mulf %55, %63 : vector<2x32xf32>
    %72 = arith.addf %70, %71 : vector<2x32xf32>
    %73 = math.tanh %72 : vector<2x32xf32>
    %74 = arith.mulf %69, %73 : vector<2x32xf32>
    %c2_29 = arith.constant 2 : index
    %c0_30 = arith.constant 0 : index
    %75 = vector.load %arg9[%c2_29, %c0_30] : memref<16x32xf32, #tpu.memory_space<vmem>>, vector<2x32xf32>
    tpu.vector_store %arg9[%c2_29, %c0_30], %74 {strides = array<i32>} : memref<16x32xf32, #tpu.memory_space<vmem>>, vector<2x32xf32>,
    %c4 = arith.constant 4 : index
    %c0_31 = arith.constant 0 : index
    %76 = vector.load %arg8[%c4, %c0_31] : memref<16x128xf32, #tpu.memory_space<vmem>>, vector<2x128xf32>
    %cst_32 = arith.constant dense<0.000000e+00> : vector<2x128xf32>
    %77 = tpu.matmul %74, %15, %cst_32 {dimension_numbers = #tpu.dot_dimension_numbers<[1], [0], [0], [1], [0, 0, 1, 1], [], []>} : vector<2x32xf32>, vector<32x128xf32>, vector<2x128xf32> -> vector<2x128xf32>
    %78 = arith.addf %76, %77 : vector<2x128xf32>
    %79 = vector.extract_strided_slice %78 {offsets = [0, 0], sizes = [2, 32], strides = [1, 1]} : vector<2x128xf32> to vector<2x32xf32>
    %80 = arith.negf %79 : vector<2x32xf32>
    %81 = math.exp %80 : vector<2x32xf32>
    %cst_33 = arith.constant 1.000000e+00 : f32
    %82 = vector.broadcast %cst_33 : f32 to vector<2x32xf32>
    %83 = arith.addf %82, %81 : vector<2x32xf32>
    %84 = arith.divf %82, %83 : vector<2x32xf32>
    %85 = vector.extract_strided_slice %78 {offsets = [0, 32], sizes = [2, 32], strides = [1, 1]} : vector<2x128xf32> to vector<2x32xf32>
    %86 = arith.negf %85 : vector<2x32xf32>
    %87 = math.exp %86 : vector<2x32xf32>
    %cst_34 = arith.constant 1.000000e+00 : f32
    %88 = vector.broadcast %cst_34 : f32 to vector<2x32xf32>
    %89 = arith.addf %88, %87 : vector<2x32xf32>
    %90 = arith.divf %88, %89 : vector<2x32xf32>
    %91 = vector.extract_strided_slice %78 {offsets = [0, 64], sizes = [2, 32], strides = [1, 1]} : vector<2x128xf32> to vector<2x32xf32>
    %92 = math.tanh %91 : vector<2x32xf32>
    %93 = vector.extract_strided_slice %78 {offsets = [0, 96], sizes = [2, 32], strides = [1, 1]} : vector<2x128xf32> to vector<2x32xf32>
    %94 = arith.negf %93 : vector<2x32xf32>
    %95 = math.exp %94 : vector<2x32xf32>
    %cst_35 = arith.constant 1.000000e+00 : f32
    %96 = vector.broadcast %cst_35 : f32 to vector<2x32xf32>
    %97 = arith.addf %96, %95 : vector<2x32xf32>
    %98 = arith.divf %96, %97 : vector<2x32xf32>
    %99 = arith.mulf %90, %72 : vector<2x32xf32>
    %100 = arith.mulf %84, %92 : vector<2x32xf32>
    %101 = arith.addf %99, %100 : vector<2x32xf32>
    %102 = math.tanh %101 : vector<2x32xf32>
    %103 = arith.mulf %98, %102 : vector<2x32xf32>
    %c4_36 = arith.constant 4 : index
    %c0_37 = arith.constant 0 : index
    %104 = vector.load %arg9[%c4_36, %c0_37] : memref<16x32xf32, #tpu.memory_space<vmem>>, vector<2x32xf32>
    tpu.vector_store %arg9[%c4_36, %c0_37], %103 {strides = array<i32>} : memref<16x32xf32, #tpu.memory_space<vmem>>, vector<2x32xf32>,
    %c6 = arith.constant 6 : index
    %c0_38 = arith.constant 0 : index
    %105 = vector.load %arg8[%c6, %c0_38] : memref<16x128xf32, #tpu.memory_space<vmem>>, vector<2x128xf32>
    %cst_39 = arith.constant dense<0.000000e+00> : vector<2x128xf32>
    %106 = tpu.matmul %103, %15, %cst_39 {dimension_numbers = #tpu.dot_dimension_numbers<[1], [0], [0], [1], [0, 0, 1, 1], [], []>} : vector<2x32xf32>, vector<32x128xf32>, vector<2x128xf32> -> vector<2x128xf32>
    %107 = arith.addf %105, %106 : vector<2x128xf32>
    %108 = vector.extract_strided_slice %107 {offsets = [0, 0], sizes = [2, 32], strides = [1, 1]} : vector<2x128xf32> to vector<2x32xf32>
    %109 = arith.negf %108 : vector<2x32xf32>
    %110 = math.exp %109 : vector<2x32xf32>
    %cst_40 = arith.constant 1.000000e+00 : f32
    %111 = vector.broadcast %cst_40 : f32 to vector<2x32xf32>
    %112 = arith.addf %111, %110 : vector<2x32xf32>
    %113 = arith.divf %111, %112 : vector<2x32xf32>
    %114 = vector.extract_strided_slice %107 {offsets = [0, 32], sizes = [2, 32], strides = [1, 1]} : vector<2x128xf32> to vector<2x32xf32>
    %115 = arith.negf %114 : vector<2x32xf32>
    %116 = math.exp %115 : vector<2x32xf32>
    %cst_41 = arith.constant 1.000000e+00 : f32
    %117 = vector.broadcast %cst_41 : f32 to vector<2x32xf32>
    %118 = arith.addf %117, %116 : vector<2x32xf32>
    %119 = arith.divf %117, %118 : vector<2x32xf32>
    %120 = vector.extract_strided_slice %107 {offsets = [0, 64], sizes = [2, 32], strides = [1, 1]} : vector<2x128xf32> to vector<2x32xf32>
    %121 = math.tanh %120 : vector<2x32xf32>
    %122 = vector.extract_strided_slice %107 {offsets = [0, 96], sizes = [2, 32], strides = [1, 1]} : vector<2x128xf32> to vector<2x32xf32>
    %123 = arith.negf %122 : vector<2x32xf32>
    %124 = math.exp %123 : vector<2x32xf32>
    %cst_42 = arith.constant 1.000000e+00 : f32
    %125 = vector.broadcast %cst_42 : f32 to vector<2x32xf32>
    %126 = arith.addf %125, %124 : vector<2x32xf32>
    %127 = arith.divf %125, %126 : vector<2x32xf32>
    %128 = arith.mulf %119, %101 : vector<2x32xf32>
    %129 = arith.mulf %113, %121 : vector<2x32xf32>
    %130 = arith.addf %128, %129 : vector<2x32xf32>
    %131 = math.tanh %130 : vector<2x32xf32>
    %132 = arith.mulf %127, %131 : vector<2x32xf32>
    %c6_43 = arith.constant 6 : index
    %c0_44 = arith.constant 0 : index
    %133 = vector.load %arg9[%c6_43, %c0_44] : memref<16x32xf32, #tpu.memory_space<vmem>>, vector<2x32xf32>
    tpu.vector_store %arg9[%c6_43, %c0_44], %132 {strides = array<i32>} : memref<16x32xf32, #tpu.memory_space<vmem>>, vector<2x32xf32>,
    %c8 = arith.constant 8 : index
    %c0_45 = arith.constant 0 : index
    %134 = vector.load %arg8[%c8, %c0_45] : memref<16x128xf32, #tpu.memory_space<vmem>>, vector<2x128xf32>
    %cst_46 = arith.constant dense<0.000000e+00> : vector<2x128xf32>
    %135 = tpu.matmul %132, %15, %cst_46 {dimension_numbers = #tpu.dot_dimension_numbers<[1], [0], [0], [1], [0, 0, 1, 1], [], []>} : vector<2x32xf32>, vector<32x128xf32>, vector<2x128xf32> -> vector<2x128xf32>
    %136 = arith.addf %134, %135 : vector<2x128xf32>
    %137 = vector.extract_strided_slice %136 {offsets = [0, 0], sizes = [2, 32], strides = [1, 1]} : vector<2x128xf32> to vector<2x32xf32>
    %138 = arith.negf %137 : vector<2x32xf32>
    %139 = math.exp %138 : vector<2x32xf32>
    %cst_47 = arith.constant 1.000000e+00 : f32
    %140 = vector.broadcast %cst_47 : f32 to vector<2x32xf32>
    %141 = arith.addf %140, %139 : vector<2x32xf32>
    %142 = arith.divf %140, %141 : vector<2x32xf32>
    %143 = vector.extract_strided_slice %136 {offsets = [0, 32], sizes = [2, 32], strides = [1, 1]} : vector<2x128xf32> to vector<2x32xf32>
    %144 = arith.negf %143 : vector<2x32xf32>
    %145 = math.exp %144 : vector<2x32xf32>
    %cst_48 = arith.constant 1.000000e+00 : f32
    %146 = vector.broadcast %cst_48 : f32 to vector<2x32xf32>
    %147 = arith.addf %146, %145 : vector<2x32xf32>
    %148 = arith.divf %146, %147 : vector<2x32xf32>
    %149 = vector.extract_strided_slice %136 {offsets = [0, 64], sizes = [2, 32], strides = [1, 1]} : vector<2x128xf32> to vector<2x32xf32>
    %150 = math.tanh %149 : vector<2x32xf32>
    %151 = vector.extract_strided_slice %136 {offsets = [0, 96], sizes = [2, 32], strides = [1, 1]} : vector<2x128xf32> to vector<2x32xf32>
    %152 = arith.negf %151 : vector<2x32xf32>
    %153 = math.exp %152 : vector<2x32xf32>
    %cst_49 = arith.constant 1.000000e+00 : f32
    %154 = vector.broadcast %cst_49 : f32 to vector<2x32xf32>
    %155 = arith.addf %154, %153 : vector<2x32xf32>
    %156 = arith.divf %154, %155 : vector<2x32xf32>
    %157 = arith.mulf %148, %130 : vector<2x32xf32>
    %158 = arith.mulf %142, %150 : vector<2x32xf32>
    %159 = arith.addf %157, %158 : vector<2x32xf32>
    %160 = math.tanh %159 : vector<2x32xf32>
    %161 = arith.mulf %156, %160 : vector<2x32xf32>
    %c8_50 = arith.constant 8 : index
    %c0_51 = arith.constant 0 : index
    %162 = vector.load %arg9[%c8_50, %c0_51] : memref<16x32xf32, #tpu.memory_space<vmem>>, vector<2x32xf32>
    tpu.vector_store %arg9[%c8_50, %c0_51], %161 {strides = array<i32>} : memref<16x32xf32, #tpu.memory_space<vmem>>, vector<2x32xf32>,
    %c10 = arith.constant 10 : index
    %c0_52 = arith.constant 0 : index
    %163 = vector.load %arg8[%c10, %c0_52] : memref<16x128xf32, #tpu.memory_space<vmem>>, vector<2x128xf32>
    %cst_53 = arith.constant dense<0.000000e+00> : vector<2x128xf32>
    %164 = tpu.matmul %161, %15, %cst_53 {dimension_numbers = #tpu.dot_dimension_numbers<[1], [0], [0], [1], [0, 0, 1, 1], [], []>} : vector<2x32xf32>, vector<32x128xf32>, vector<2x128xf32> -> vector<2x128xf32>
    %165 = arith.addf %163, %164 : vector<2x128xf32>
    %166 = vector.extract_strided_slice %165 {offsets = [0, 0], sizes = [2, 32], strides = [1, 1]} : vector<2x128xf32> to vector<2x32xf32>
    %167 = arith.negf %166 : vector<2x32xf32>
    %168 = math.exp %167 : vector<2x32xf32>
    %cst_54 = arith.constant 1.000000e+00 : f32
    %169 = vector.broadcast %cst_54 : f32 to vector<2x32xf32>
    %170 = arith.addf %169, %168 : vector<2x32xf32>
    %171 = arith.divf %169, %170 : vector<2x32xf32>
    %172 = vector.extract_strided_slice %165 {offsets = [0, 32], sizes = [2, 32], strides = [1, 1]} : vector<2x128xf32> to vector<2x32xf32>
    %173 = arith.negf %172 : vector<2x32xf32>
    %174 = math.exp %173 : vector<2x32xf32>
    %cst_55 = arith.constant 1.000000e+00 : f32
    %175 = vector.broadcast %cst_55 : f32 to vector<2x32xf32>
    %176 = arith.addf %175, %174 : vector<2x32xf32>
    %177 = arith.divf %175, %176 : vector<2x32xf32>
    %178 = vector.extract_strided_slice %165 {offsets = [0, 64], sizes = [2, 32], strides = [1, 1]} : vector<2x128xf32> to vector<2x32xf32>
    %179 = math.tanh %178 : vector<2x32xf32>
    %180 = vector.extract_strided_slice %165 {offsets = [0, 96], sizes = [2, 32], strides = [1, 1]} : vector<2x128xf32> to vector<2x32xf32>
    %181 = arith.negf %180 : vector<2x32xf32>
    %182 = math.exp %181 : vector<2x32xf32>
    %cst_56 = arith.constant 1.000000e+00 : f32
    %183 = vector.broadcast %cst_56 : f32 to vector<2x32xf32>
    %184 = arith.addf %183, %182 : vector<2x32xf32>
    %185 = arith.divf %183, %184 : vector<2x32xf32>
    %186 = arith.mulf %177, %159 : vector<2x32xf32>
    %187 = arith.mulf %171, %179 : vector<2x32xf32>
    %188 = arith.addf %186, %187 : vector<2x32xf32>
    %189 = math.tanh %188 : vector<2x32xf32>
    %190 = arith.mulf %185, %189 : vector<2x32xf32>
    %c10_57 = arith.constant 10 : index
    %c0_58 = arith.constant 0 : index
    %191 = vector.load %arg9[%c10_57, %c0_58] : memref<16x32xf32, #tpu.memory_space<vmem>>, vector<2x32xf32>
    tpu.vector_store %arg9[%c10_57, %c0_58], %190 {strides = array<i32>} : memref<16x32xf32, #tpu.memory_space<vmem>>, vector<2x32xf32>,
    %c12 = arith.constant 12 : index
    %c0_59 = arith.constant 0 : index
    %192 = vector.load %arg8[%c12, %c0_59] : memref<16x128xf32, #tpu.memory_space<vmem>>, vector<2x128xf32>
    %cst_60 = arith.constant dense<0.000000e+00> : vector<2x128xf32>
    %193 = tpu.matmul %190, %15, %cst_60 {dimension_numbers = #tpu.dot_dimension_numbers<[1], [0], [0], [1], [0, 0, 1, 1], [], []>} : vector<2x32xf32>, vector<32x128xf32>, vector<2x128xf32> -> vector<2x128xf32>
    %194 = arith.addf %192, %193 : vector<2x128xf32>
    %195 = vector.extract_strided_slice %194 {offsets = [0, 0], sizes = [2, 32], strides = [1, 1]} : vector<2x128xf32> to vector<2x32xf32>
    %196 = arith.negf %195 : vector<2x32xf32>
    %197 = math.exp %196 : vector<2x32xf32>
    %cst_61 = arith.constant 1.000000e+00 : f32
    %198 = vector.broadcast %cst_61 : f32 to vector<2x32xf32>
    %199 = arith.addf %198, %197 : vector<2x32xf32>
    %200 = arith.divf %198, %199 : vector<2x32xf32>
    %201 = vector.extract_strided_slice %194 {offsets = [0, 32], sizes = [2, 32], strides = [1, 1]} : vector<2x128xf32> to vector<2x32xf32>
    %202 = arith.negf %201 : vector<2x32xf32>
    %203 = math.exp %202 : vector<2x32xf32>
    %cst_62 = arith.constant 1.000000e+00 : f32
    %204 = vector.broadcast %cst_62 : f32 to vector<2x32xf32>
    %205 = arith.addf %204, %203 : vector<2x32xf32>
    %206 = arith.divf %204, %205 : vector<2x32xf32>
    %207 = vector.extract_strided_slice %194 {offsets = [0, 64], sizes = [2, 32], strides = [1, 1]} : vector<2x128xf32> to vector<2x32xf32>
    %208 = math.tanh %207 : vector<2x32xf32>
    %209 = vector.extract_strided_slice %194 {offsets = [0, 96], sizes = [2, 32], strides = [1, 1]} : vector<2x128xf32> to vector<2x32xf32>
    %210 = arith.negf %209 : vector<2x32xf32>
    %211 = math.exp %210 : vector<2x32xf32>
    %cst_63 = arith.constant 1.000000e+00 : f32
    %212 = vector.broadcast %cst_63 : f32 to vector<2x32xf32>
    %213 = arith.addf %212, %211 : vector<2x32xf32>
    %214 = arith.divf %212, %213 : vector<2x32xf32>
    %215 = arith.mulf %206, %188 : vector<2x32xf32>
    %216 = arith.mulf %200, %208 : vector<2x32xf32>
    %217 = arith.addf %215, %216 : vector<2x32xf32>
    %218 = math.tanh %217 : vector<2x32xf32>
    %219 = arith.mulf %214, %218 : vector<2x32xf32>
    %c12_64 = arith.constant 12 : index
    %c0_65 = arith.constant 0 : index
    %220 = vector.load %arg9[%c12_64, %c0_65] : memref<16x32xf32, #tpu.memory_space<vmem>>, vector<2x32xf32>
    tpu.vector_store %arg9[%c12_64, %c0_65], %219 {strides = array<i32>} : memref<16x32xf32, #tpu.memory_space<vmem>>, vector<2x32xf32>,
    %c14 = arith.constant 14 : index
    %c0_66 = arith.constant 0 : index
    %221 = vector.load %arg8[%c14, %c0_66] : memref<16x128xf32, #tpu.memory_space<vmem>>, vector<2x128xf32>
    %cst_67 = arith.constant dense<0.000000e+00> : vector<2x128xf32>
    %222 = tpu.matmul %219, %15, %cst_67 {dimension_numbers = #tpu.dot_dimension_numbers<[1], [0], [0], [1], [0, 0, 1, 1], [], []>} : vector<2x32xf32>, vector<32x128xf32>, vector<2x128xf32> -> vector<2x128xf32>
    %223 = arith.addf %221, %222 : vector<2x128xf32>
    %224 = vector.extract_strided_slice %223 {offsets = [0, 0], sizes = [2, 32], strides = [1, 1]} : vector<2x128xf32> to vector<2x32xf32>
    %225 = arith.negf %224 : vector<2x32xf32>
    %226 = math.exp %225 : vector<2x32xf32>
    %cst_68 = arith.constant 1.000000e+00 : f32
    %227 = vector.broadcast %cst_68 : f32 to vector<2x32xf32>
    %228 = arith.addf %227, %226 : vector<2x32xf32>
    %229 = arith.divf %227, %228 : vector<2x32xf32>
    %230 = vector.extract_strided_slice %223 {offsets = [0, 32], sizes = [2, 32], strides = [1, 1]} : vector<2x128xf32> to vector<2x32xf32>
    %231 = arith.negf %230 : vector<2x32xf32>
    %232 = math.exp %231 : vector<2x32xf32>
    %cst_69 = arith.constant 1.000000e+00 : f32
    %233 = vector.broadcast %cst_69 : f32 to vector<2x32xf32>
    %234 = arith.addf %233, %232 : vector<2x32xf32>
    %235 = arith.divf %233, %234 : vector<2x32xf32>
    %236 = vector.extract_strided_slice %223 {offsets = [0, 64], sizes = [2, 32], strides = [1, 1]} : vector<2x128xf32> to vector<2x32xf32>
    %237 = math.tanh %236 : vector<2x32xf32>
    %238 = vector.extract_strided_slice %223 {offsets = [0, 96], sizes = [2, 32], strides = [1, 1]} : vector<2x128xf32> to vector<2x32xf32>
    %239 = arith.negf %238 : vector<2x32xf32>
    %240 = math.exp %239 : vector<2x32xf32>
    %cst_70 = arith.constant 1.000000e+00 : f32
    %241 = vector.broadcast %cst_70 : f32 to vector<2x32xf32>
    %242 = arith.addf %241, %240 : vector<2x32xf32>
    %243 = arith.divf %241, %242 : vector<2x32xf32>
    %244 = arith.mulf %235, %217 : vector<2x32xf32>
    %245 = arith.mulf %229, %237 : vector<2x32xf32>
    %246 = arith.addf %244, %245 : vector<2x32xf32>
    %247 = math.tanh %246 : vector<2x32xf32>
    %248 = arith.mulf %243, %247 : vector<2x32xf32>
    %c14_71 = arith.constant 14 : index
    %c0_72 = arith.constant 0 : index
    %249 = vector.load %arg9[%c14_71, %c0_72] : memref<16x32xf32, #tpu.memory_space<vmem>>, vector<2x32xf32>
    tpu.vector_store %arg9[%c14_71, %c0_72], %248 {strides = array<i32>} : memref<16x32xf32, #tpu.memory_space<vmem>>, vector<2x32xf32>,
    %c0_73 = arith.constant 0 : index
    %c0_74 = arith.constant 0 : index
    %250 = vector.load %arg9[%c0_73, %c0_74] : memref<16x32xf32, #tpu.memory_space<vmem>>, vector<16x32xf32>
    %c0_75 = arith.constant 0 : index
    %c0_76 = arith.constant 0 : index
    %251 = vector.load %arg5[%c0_75, %c0_76] : memref<32x8xf32, #tpu.memory_space<vmem>>, vector<32x8xf32>
    %cst_77 = arith.constant dense<0.000000e+00> : vector<16x8xf32>
    %252 = tpu.matmul %250, %251, %cst_77 {dimension_numbers = #tpu.dot_dimension_numbers<[1], [0], [0], [1], [0, 0, 1, 1], [], []>} : vector<16x32xf32>, vector<32x8xf32>, vector<16x8xf32> -> vector<16x8xf32>
    %c0_78 = arith.constant 0 : index
    %c0_79 = arith.constant 0 : index
    %253 = vector.load %arg6[%c0_78, %c0_79] : memref<1x8xf32, #tpu.memory_space<vmem>>, vector<1x8xf32>
    %254 = vector.broadcast %253 : vector<1x8xf32> to vector<16x8xf32>
    %255 = arith.addf %252, %254 : vector<16x8xf32>
    %c0_80 = arith.constant 0 : index
    %c0_81 = arith.constant 0 : index
    %256 = vector.load %arg7[%c0_80, %c0_81] : memref<16x8xf32, #tpu.memory_space<vmem>>, vector<16x8xf32>
    tpu.vector_store %arg7[%c0_80, %c0_81], %255 {strides = array<i32>} : memref<16x8xf32, #tpu.memory_space<vmem>>, vector<16x8xf32>,
    return
  }
}

</mosaic_0001>

<llo_original>
// kernel: tpu_custom_call.1
$region0: #{tpu_custom_call.1}
  #allocation0 [shape = 'u32[]', space=smem, size = 0x4, offset = 0x4, fixed_abs, tag = 'smem constant byte address 0x4 - core index']
  #allocation1 [shape = 'u32[144,128]{1,0:T(1,128)}', space=vmem, size = 0x12000, scoped, tag = 'internal scratch']
  #allocation2 [shape = 'f32[16,128]{1,0:T(8,128)}', space=vmem, size = 0x2000, scoped, tag = 'scratch operand']
  #allocation3 [shape = 'f32[16,32]{1,0:T(8,128)}', space=vmem, size = 0x2000, scoped, tag = 'scratch operand']
  %s0 = inlined_call_operand.vmem [shape: s32[16,1], index: 0, kind: input, shape index: {}]
  %s1 = inlined_call_operand.vmem [shape: f32[50,32], index: 1, kind: input, shape index: {}]
  %s2 = inlined_call_operand.vmem [shape: f32[32,128], index: 2, kind: input, shape index: {}]
  %s3 = inlined_call_operand.vmem [shape: f32[32,128], index: 3, kind: input, shape index: {}]
  %s4 = inlined_call_operand.vmem [shape: f32[1,128], index: 4, kind: input, shape index: {}]
  %s5 = inlined_call_operand.vmem [shape: f32[32,8], index: 5, kind: input, shape index: {}]
  %s6 = inlined_call_operand.vmem [shape: f32[1,8], index: 6, kind: input, shape index: {}]
  %s7 = inlined_call_operand.vmem [shape: f32[16,8], index: 7, kind: output, shape index: {}]
  %s8 = sld [smem:[#allocation0]]
  $region38: #{tpu_custom_call.1} parent=0
    _
  %s10 = ssub.s32 1, %s8
  %s11 = scalar_select 0, %s10, %s8
  // Predicated region
  $region2: #{tpu_custom_call.1} parent=0 // pred_check
    _
  $region3: #{tpu_custom_call.1} parent=0 // pred_check_branch
    %13 = sbr.rel (0) target = $region5
  $region4: #{tpu_custom_call.1} parent=0 // pred_region
    _
  $region5: #{tpu_custom_call.1} parent=0 // pred_fallthru
    _
  // Predicated region
  $region6: #{tpu_custom_call.1} parent=0 // pred_check
    _
  $region7: #{tpu_custom_call.1} parent=0 // pred_check_branch
    %15 = sbr.rel (0) target = $region9
  $region8: #{tpu_custom_call.1} parent=0 // pred_region
    _
  $region9: #{tpu_custom_call.1} parent=0 // pred_fallthru
    _
  // Predicated region
  $region10: #{tpu_custom_call.1} parent=0 // pred_check
    _
  $region11: #{tpu_custom_call.1} parent=0 // pred_check_branch
    %17 = sbr.rel (0) target = $region13
  $region12: #{tpu_custom_call.1} parent=0 // pred_region
    _
  $region13: #{tpu_custom_call.1} parent=0 // pred_fallthru
    _
  // Predicated region
  $region14: #{tpu_custom_call.1} parent=0 // pred_check
    _
  $region15: #{tpu_custom_call.1} parent=0 // pred_check_branch
    %19 = sbr.rel (0) target = $region17
  $region16: #{tpu_custom_call.1} parent=0 // pred_region
    _
  $region17: #{tpu_custom_call.1} parent=0 // pred_fallthru
    _
  // Predicated region
  $region18: #{tpu_custom_call.1} parent=0 // pred_check
    _
  $region19: #{tpu_custom_call.1} parent=0 // pred_check_branch
    %21 = sbr.rel (0) target = $region21
  $region20: #{tpu_custom_call.1} parent=0 // pred_region
    _
  $region21: #{tpu_custom_call.1} parent=0 // pred_fallthru
    _
  // Predicated region
  $region22: #{tpu_custom_call.1} parent=0 // pred_check
    _
  $region23: #{tpu_custom_call.1} parent=0 // pred_check_branch
    %23 = sbr.rel (0) target = $region25
  $region24: #{tpu_custom_call.1} parent=0 // pred_region
    _
  $region25: #{tpu_custom_call.1} parent=0 // pred_fallthru
    _
  // Predicated region
  $region26: #{tpu_custom_call.1} parent=0 // pred_check
    _
  $region27: #{tpu_custom_call.1} parent=0 // pred_check_branch
    %25 = sbr.rel (0) target = $region29
  $region28: #{tpu_custom_call.1} parent=0 // pred_region
    _
  $region29: #{tpu_custom_call.1} parent=0 // pred_fallthru
    _
  %v26 = vld [vmem:[%s0] sm:$0xff]
  %v27 = vld [vmem:[%s0 + $0x8] sm:$0xff]
  %v28 = vlaneseq
  %v29 = vand.u32 %v28, 127
  %30 = vset.pattern.permute.xlu0 0
  %31 = vperm.xlu0 %30, %v26
  %v32 = vpop.permute.xlu0 %31
  %33 = vset.pattern.permute.xlu0 0
  %34 = vperm.xlu0 %33, %v27
  %v35 = vpop.permute.xlu0 %34
  %vm36 = vcmp.eq.s32.totalorder %v29, %v32
  %vm37 = vcmp.eq.s32.totalorder %v29, %v35
  %v38 = vsel %vm36, 1.0, 0.0
  %v39 = vsel %vm37, 1.0, 0.0
  %v40 = vld [vmem:[%s1] sm:$0xff]
  %v41 = vld [vmem:[%s1 + $0x8] sm:$0xff]
  %v42 = vld [vmem:[%s1 + $0x10] sm:$0xff]
  %v43 = vld [vmem:[%s1 + $0x18] sm:$0xff]
  %v44 = vld [vmem:[%s1 + $0x20] sm:$0xff]
  %v45 = vld [vmem:[%s1 + $0x28] sm:$0xff]
  %v46 = vld [vmem:[%s1 + $0x30] sm:$0x3]
  %vm47 = vcmask 408576
  %v49 = vsel %vm47, %v38, 0
  %v52 = vsel %vm47, %v39, 0
  %vm54 = vcmask 1041408
  %v56 = vsel %vm54, %v46, 0
  %58 = vmatprep.subr.mxu0 0.0
  %59 = vmatpush1.msra.mxu0 %v40
  %60 = vmatprep.subr.mxu0 0.0
  %61 = vmatpush1.msra.mxu0 %v41
  %62 = vmatprep.subr.mxu0 0.0
  %63 = vmatpush1.msra.mxu0 %v42
  %64 = vmatprep.subr.mxu0 0.0
  %65 = vmatpush1.msra.mxu0 %v43
  %66 = vmatprep.subr.mxu0 0.0
  %67 = vmatpush1.msra.mxu0 %v44
  %68 = vmatprep.subr.mxu0 0.0
  %69 = vmatpush1.msra.mxu0 %v45
  %70 = vmatprep.subr.mxu0 0.0
  %71 = vmatpush1.msra.mxu0 %v56
  %72 = vmatprep.subr.mxu0 0.0
  %73 = vmatpush1.msra.mxu0 0.0
  %74 = vmatprep.subr.mxu0 0.0
  %75 = vmatpush1.msra.mxu0 0.0
  %76 = vmatprep.subr.mxu0 0.0
  %77 = vmatpush1.msra.mxu0 0.0
  %78 = vmatprep.subr.mxu0 0.0
  %79 = vmatpush1.msra.mxu0 0.0
  %80 = vmatprep.subr.mxu0 0.0
  %81 = vmatpush1.msra.mxu0 0.0
  %82 = vmatprep.subr.mxu0 0.0
  %83 = vmatpush1.msra.mxu0 0.0
  %84 = vmatprep.subr.mxu0 0.0
  %85 = vmatpush1.msra.mxu0 0.0
  %86 = vmatprep.subr.mxu0 0.0
  %87 = vmatpush1.msra.mxu0 0.0
  %88 = vmatprep.subr.mxu0 0.0
  %89 = vmatpush1.msra.mxu0 0.0
  %90 = vmatprep.subr.mxu0 0.0
  %91 = vmatpush1.msra.mxu0 0.0
  %92 = vmatprep.subr.mxu0 0.0
  %93 = vmatpush1.msra.mxu0 0.0
  %94 = vmatprep.subr.mxu0 0.0
  %95 = vmatpush1.msra.mxu0 0.0
  %96 = vmatprep.subr.mxu0 0.0
  %97 = vmatpush1.msra.mxu0 0.0
  %98 = vmatprep.subr.mxu0 0.0
  %99 = vmatpush1.msra.mxu0 0.0
  %100 = vmatprep.subr.mxu0 0.0
  %101 = vmatpush1.msra.mxu0 0.0
  %102 = vmatprep.subr.mxu0 0.0
  %103 = vmatpush1.msra.mxu0 0.0
  %104 = vmatprep.subr.mxu0 0.0
  %105 = vmatpush1.msra.mxu0 0.0
  %106 = vmatprep.subr.mxu0 0.0
  %107 = vmatpush1.msra.mxu0 0.0
  %108 = vmatprep.subr.mxu0 0.0
  %109 = vmatpush1.msra.mxu0 0.0
  %110 = vmatprep.subr.mxu0 0.0
  %111 = vmatpush1.msra.mxu0 0.0
  %112 = vmatprep.subr.mxu0 0.0
  %113 = vmatpush1.msra.mxu0 0.0
  %114 = vmatprep.subr.mxu0 0.0
  %115 = vmatpush1.msra.mxu0 0.0
  %116 = vmatprep.subr.mxu0 0.0
  %117 = vmatpush1.msra.mxu0 0.0
  %118 = vmatprep.subr.mxu0 0.0
  %119 = vmatpush1.msra.mxu0 0.0
  %120 = vmatprep.subr.mxu0 0.0
  %121 = vmatpush1.msra.mxu0 0.0
  %122 = vmatprep.mubr.f32.mxu0 0.0
  %123 = vmatmul.mubr.f32.gmra.mrb[0].mxu0 %v49
  %v124 = vpop.f32.mrb[0].mxu0
  %v125 = vadd.f32 0.0, %v124
  %v126 = vpop.f32.mrb[0].mxu0
  %127 = vmatprep.mubr.f32.mxu0 0.0
  %128 = vmatmul.mubr.f32.gmra.mrb[0].mxu0 %v52
  %v129 = vpop.f32.mrb[0].mxu0
  %v130 = vadd.f32 0.0, %v129
  %v131 = vpop.f32.mrb[0].mxu0
  %132 = vdwg.mxu0
  %v133 = vld [vmem:[%s2] sm:$0xff]
  %v134 = vld [vmem:[%s2 + $0x8] sm:$0xff]
  %v135 = vld [vmem:[%s2 + $0x10] sm:$0xff]
  %v136 = vld [vmem:[%s2 + $0x18] sm:$0xff]
  %v137 = vld [vmem:[%s4] sm:$0x1]
  %v139 = vlaneseq
  %v140 = vshrl.u32 %v139, 7
  %v141 = vsub.s32 0, %v140
  %v142 = vrot.slane %v137, %v141
  %vm144 = vcmask 261120
  %v146 = vsel %vm144, %v125, 0
  %v149 = vsel %vm144, %v130, 0
  %151 = vmatprep.subr.mxu0 0.0
  %152 = vmatpush1.msra.mxu0 %v133
  %153 = vmatprep.subr.mxu0 0.0
  %154 = vmatpush1.msra.mxu0 %v134
  %155 = vmatprep.subr.mxu0 0.0
  %156 = vmatpush1.msra.mxu0 %v135
  %157 = vmatprep.subr.mxu0 0.0
  %158 = vmatpush1.msra.mxu0 %v136
  %159 = vmatprep.subr.mxu0 0.0
  %160 = vmatpush1.msra.mxu0 0.0
  %161 = vmatprep.subr.mxu0 0.0
  %162 = vmatpush1.msra.mxu0 0.0
  %163 = vmatprep.subr.mxu0 0.0
  %164 = vmatpush1.msra.mxu0 0.0
  %165 = vmatprep.subr.mxu0 0.0
  %166 = vmatpush1.msra.mxu0 0.0
  %167 = vmatprep.subr.mxu0 0.0
  %168 = vmatpush1.msra.mxu0 0.0
  %169 = vmatprep.subr.mxu0 0.0
  %170 = vmatpush1.msra.mxu0 0.0
  %171 = vmatprep.subr.mxu0 0.0
  %172 = vmatpush1.msra.mxu0 0.0
  %173 = vmatprep.subr.mxu0 0.0
  %174 = vmatpush1.msra.mxu0 0.0
  %175 = vmatprep.subr.mxu0 0.0
  %176 = vmatpush1.msra.mxu0 0.0
  %177 = vmatprep.subr.mxu0 0.0
  %178 = vmatpush1.msra.mxu0 0.0
  %179 = vmatprep.subr.mxu0 0.0
  %180 = vmatpush1.msra.mxu0 0.0
  %181 = vmatprep.subr.mxu0 0.0
  %182 = vmatpush1.msra.mxu0 0.0
  %183 = vmatprep.subr.mxu0 0.0
  %184 = vmatpush1.msra.mxu0 0.0
  %185 = vmatprep.subr.mxu0 0.0
  %186 = vmatpush1.msra.mxu0 0.0
  %187 = vmatprep.subr.mxu0 0.0
  %188 = vmatpush1.msra.mxu0 0.0
  %189 = vmatprep.subr.mxu0 0.0
  %190 = vmatpush1.msra.mxu0 0.0
  %191 = vmatprep.subr.mxu0 0.0
  %192 = vmatpush1.msra.mxu0 0.0
  %193 = vmatprep.subr.mxu0 0.0
  %194 = vmatpush1.msra.mxu0 0.0
  %195 = vmatprep.subr.mxu0 0.0
  %196 = vmatpush1.msra.mxu0 0.0
  %197 = vmatprep.subr.mxu0 0.0
  %198 = vmatpush1.msra.mxu0 0.0
  %199 = vmatprep.subr.mxu0 0.0
  %200 = vmatpush1.msra.mxu0 0.0
  %201 = vmatprep.subr.mxu0 0.0
  %202 = vmatpush1.msra.mxu0 0.0
  %203 = vmatprep.subr.mxu0 0.0
  %204 = vmatpush1.msra.mxu0 0.0
  %205 = vmatprep.subr.mxu0 0.0
  %206 = vmatpush1.msra.mxu0 0.0
  %207 = vmatprep.subr.mxu0 0.0
  %208 = vmatpush1.msra.mxu0 0.0
  %209 = vmatprep.subr.mxu0 0.0
  %210 = vmatpush1.msra.mxu0 0.0
  %211 = vmatprep.subr.mxu0 0.0
  %212 = vmatpush1.msra.mxu0 0.0
  %213 = vmatprep.subr.mxu0 0.0
  %214 = vmatpush1.msra.mxu0 0.0
  %215 = vmatprep.mubr.f32.mxu0 0.0
  %216 = vmatmul.mubr.f32.gmra.mrb[0].mxu0 %v146
  %v217 = vpop.f32.mrb[0].mxu0
  %v218 = vadd.f32 %v142, %v217
  %v219 = vpop.f32.mrb[0].mxu0
  %220 = vmatprep.mubr.f32.mxu0 0.0
  %221 = vmatmul.mubr.f32.gmra.mrb[0].mxu0 %v149
  %v222 = vpop.f32.mrb[0].mxu0
  %v223 = vadd.f32 %v142, %v222
  %v224 = vpop.f32.mrb[0].mxu0
  %225 = vdwg.mxu0
  %226 = vst [vmem:[#allocation2] sm:$0xff] %v218
  %227 = vst [vmem:[#allocation2 + $0x8] sm:$0xff] %v223
  %v228 = vld [vmem:[%s3] sm:$0xff]
  %v229 = vld [vmem:[%s3 + $0x8] sm:$0xff]
  %v230 = vld [vmem:[%s3 + $0x10] sm:$0xff]
  %v231 = vld [vmem:[%s3 + $0x18] sm:$0xff]
  %v232 = vld [vmem:[#allocation2] sm:$0x3]
  %v234 = vsel %vm144, 0.0, 0
  %236 = vmatprep.subr.mxu0 0.0
  %237 = vmatpush1.msra.mxu0 %v228
  %238 = vmatprep.subr.mxu0 0.0
  %239 = vmatpush1.msra.mxu0 %v229
  %240 = vmatprep.subr.mxu0 0.0
  %241 = vmatpush1.msra.mxu0 %v230
  %242 = vmatprep.subr.mxu0 0.0
  %243 = vmatpush1.msra.mxu0 %v231
  %244 = vmatprep.subr.mxu0 0.0
  %245 = vmatpush1.msra.mxu0 0.0
  %246 = vmatprep.subr.mxu0 0.0
  %247 = vmatpush1.msra.mxu0 0.0
  %248 = vmatprep.subr.mxu0 0.0
  %249 = vmatpush1.msra.mxu0 0.0
  %250 = vmatprep.subr.mxu0 0.0
  %251 = vmatpush1.msra.mxu0 0.0
  %252 = vmatprep.subr.mxu0 0.0
  %253 = vmatpush1.msra.mxu0 0.0
  %254 = vmatprep.subr.mxu0 0.0
  %255 = vmatpush1.msra.mxu0 0.0
  %256 = vmatprep.subr.mxu0 0.0
  %257 = vmatpush1.msra.mxu0 0.0
  %258 = vmatprep.subr.mxu0 0.0
  %259 = vmatpush1.msra.mxu0 0.0
  %260 = vmatprep.subr.mxu0 0.0
  %261 = vmatpush1.msra.mxu0 0.0
  %262 = vmatprep.subr.mxu0 0.0
  %263 = vmatpush1.msra.mxu0 0.0
  %264 = vmatprep.subr.mxu0 0.0
  %265 = vmatpush1.msra.mxu0 0.0
  %266 = vmatprep.subr.mxu0 0.0
  %267 = vmatpush1.msra.mxu0 0.0
  %268 = vmatprep.subr.mxu0 0.0
  %269 = vmatpush1.msra.mxu0 0.0
  %270 = vmatprep.subr.mxu0 0.0
  %271 = vmatpush1.msra.mxu0 0.0
  %272 = vmatprep.subr.mxu0 0.0
  %273 = vmatpush1.msra.mxu0 0.0
  %274 = vmatprep.subr.mxu0 0.0
  %275 = vmatpush1.msra.mxu0 0.0
  %276 = vmatprep.subr.mxu0 0.0
  %277 = vmatpush1.msra.mxu0 0.0
  %278 = vmatprep.subr.mxu0 0.0
  %279 = vmatpush1.msra.mxu0 0.0
  %280 = vmatprep.subr.mxu0 0.0
  %281 = vmatpush1.msra.mxu0 0.0
  %282 = vmatprep.subr.mxu0 0.0
  %283 = vmatpush1.msra.mxu0 0.0
  %284 = vmatprep.subr.mxu0 0.0
  %285 = vmatpush1.msra.mxu0 0.0
  %286 = vmatprep.subr.mxu0 0.0
  %287 = vmatpush1.msra.mxu0 0.0
  %288 = vmatprep.subr.mxu0 0.0
  %289 = vmatpush1.msra.mxu0 0.0
  %290 = vmatprep.subr.mxu0 0.0
  %291 = vmatpush1.msra.mxu0 0.0
  %292 = vmatprep.subr.mxu0 0.0
  %293 = vmatpush1.msra.mxu0 0.0
  %294 = vmatprep.subr.mxu0 0.0
  %295 = vmatpush1.msra.mxu0 0.0
  %296 = vmatprep.subr.mxu0 0.0
  %297 = vmatpush1.msra.mxu0 0.0
  %298 = vmatprep.subr.mxu0 0.0
  %299 = vmatpush1.msra.mxu0 0.0
  %300 = vmatprep.mubr.f32.mxu0 0.0
  %301 = vmatmul.mubr.f32.gmra.mrb[0].mxu0 %v234
  %v302 = vpop.f32.mrb[0].mxu0
  %v303 = vadd.f32 0.0, %v302
  %v304 = vpop.f32.mrb[0].mxu0
  %305 = vdwg.mxu0
  %v306 = vadd.f32 %v232, %v303
  %v307 = vxor.u32 %v306, 2147483648
  %v308 = vmul.f32 %v307, 1.442695
  %v309 = vpow.pop %v308
  %v310 = vadd.f32 %v309, 1.0
  %v311 = vrcp.pop %v310
  %v312 = vmul.f32 1.0, %v311
  %v313 = vtanh.pop %v306
  %v314 = vmul.f32 %v312, 0.0
  %316 = vrot.lane.b32.xlu0 %v313, 64
  %v317 = vpop.permute.xlu0 %316
  %v319 = vmul.f32 %v312, %v317
  %321 = vrot.lane.b32.xlu0 %v319, 32
  %v322 = vpop.permute.xlu0 %321
  %v324 = vadd.f32 %v314, %v322
  %v325 = vtanh.pop %v324
  %327 = vrot.lane.b32.xlu0 %v325, 64
  %v328 = vpop.permute.xlu0 %327
  %v330 = vmul.f32 %v312, %v328
  %332 = vrot.lane.b32.xlu0 %v330, 32
  %v333 = vpop.permute.xlu0 %332
  %vm335 = vcmask 254976
  %336 = vst.msk [vmem:[#allocation3] sm:$0x3] %vm335, %v333
  %v337 = vld [vmem:[#allocation2 + $0x2] sm:$0x3]
  %v338 = vsel %vm144, %v333, 0
  %340 = vmatprep.subr.mxu0 0.0
  %341 = vmatpush1.msra.mxu0 %v228
  %342 = vmatprep.subr.mxu0 0.0
  %343 = vmatpush1.msra.mxu0 %v229
  %344 = vmatprep.subr.mxu0 0.0
  %345 = vmatpush1.msra.mxu0 %v230
  %346 = vmatprep.subr.mxu0 0.0
  %347 = vmatpush1.msra.mxu0 %v231
  %348 = vmatprep.subr.mxu0 0.0
  %349 = vmatpush1.msra.mxu0 0.0
  %350 = vmatprep.subr.mxu0 0.0
  %351 = vmatpush1.msra.mxu0 0.0
  %352 = vmatprep.subr.mxu0 0.0
  %353 = vmatpush1.msra.mxu0 0.0
  %354 = vmatprep.subr.mxu0 0.0
  %355 = vmatpush1.msra.mxu0 0.0
  %356 = vmatprep.subr.mxu0 0.0
  %357 = vmatpush1.msra.mxu0 0.0
  %358 = vmatprep.subr.mxu0 0.0
  %359 = vmatpush1.msra.mxu0 0.0
  %360 = vmatprep.subr.mxu0 0.0
  %361 = vmatpush1.msra.mxu0 0.0
  %362 = vmatprep.subr.mxu0 0.0
  %363 = vmatpush1.msra.mxu0 0.0
  %364 = vmatprep.subr.mxu0 0.0
  %365 = vmatpush1.msra.mxu0 0.0
  %366 = vmatprep.subr.mxu0 0.0
  %367 = vmatpush1.msra.mxu0 0.0
  %368 = vmatprep.subr.mxu0 0.0
  %369 = vmatpush1.msra.mxu0 0.0
  %370 = vmatprep.subr.mxu0 0.0
  %371 = vmatpush1.msra.mxu0 0.0
  %372 = vmatprep.subr.mxu0 0.0
  %373 = vmatpush1.msra.mxu0 0.0
  %374 = vmatprep.subr.mxu0 0.0
  %375 = vmatpush1.msra.mxu0 0.0
  %376 = vmatprep.subr.mxu0 0.0
  %377 = vmatpush1.msra.mxu0 0.0
  %378 = vmatprep.subr.mxu0 0.0
  %379 = vmatpush1.msra.mxu0 0.0
  %380 = vmatprep.subr.mxu0 0.0
  %381 = vmatpush1.msra.mxu0 0.0
  %382 = vmatprep.subr.mxu0 0.0
  %383 = vmatpush1.msra.mxu0 0.0
  %384 = vmatprep.subr.mxu0 0.0
  %385 = vmatpush1.msra.mxu0 0.0
  %386 = vmatprep.subr.mxu0 0.0
  %387 = vmatpush1.msra.mxu0 0.0
  %388 = vmatprep.subr.mxu0 0.0
  %389 = vmatpush1.msra.mxu0 0.0
  %390 = vmatprep.subr.mxu0 0.0
  %391 = vmatpush1.msra.mxu0 0.0
  %392 = vmatprep.subr.mxu0 0.0
  %393 = vmatpush1.msra.mxu0 0.0
  %394 = vmatprep.subr.mxu0 0.0
  %395 = vmatpush1.msra.mxu0 0.0
  %396 = vmatprep.subr.mxu0 0.0
  %397 = vmatpush1.msra.mxu0 0.0
  %398 = vmatprep.subr.mxu0 0.0
  %399 = vmatpush1.msra.mxu0 0.0
  %400 = vmatprep.subr.mxu0 0.0
  %401 = vmatpush1.msra.mxu0 0.0
  %402 = vmatprep.subr.mxu0 0.0
  %403 = vmatpush1.msra.mxu0 0.0
  %404 = vmatprep.mubr.f32.mxu0 0.0
  %405 = vmatmul.mubr.f32.gmra.mrb[0].mxu0 %v338
  %v406 = vpop.f32.mrb[0].mxu0
  %v407 = vadd.f32 0.0, %v406
  %v408 = vpop.f32.mrb[0].mxu0
  %409 = vdwg.mxu0
  %v410 = vadd.f32 %v337, %v407
  %v411 = vxor.u32 %v410, 2147483648
  %v412 = vmul.f32 %v411, 1.442695
  %v413 = vpow.pop %v412
  %v414 = vadd.f32 %v413, 1.0
  %v415 = vrcp.pop %v414
  %v416 = vmul.f32 1.0, %v415
  %v417 = vtanh.pop %v410
  %v418 = vmul.f32 %v416, %v324
  %420 = vrot.lane.b32.xlu0 %v417, 64
  %v421 = vpop.permute.xlu0 %420
  %v423 = vmul.f32 %v416, %v421
  %425 = vrot.lane.b32.xlu0 %v423, 32
  %v426 = vpop.permute.xlu0 %425
  %v428 = vadd.f32 %v418, %v426
  %v429 = vtanh.pop %v428
  %431 = vrot.lane.b32.xlu0 %v429, 64
  %v432 = vpop.permute.xlu0 %431
  %v434 = vmul.f32 %v416, %v432
  %436 = vrot.lane.b32.xlu0 %v434, 32
  %v437 = vpop.permute.xlu0 %436
  %439 = vst.msk [vmem:[#allocation3 + $0x2] sm:$0x3] %vm335, %v437
  %v440 = vld [vmem:[#allocation2 + $0x4] sm:$0x3]
  %v441 = vsel %vm144, %v437, 0
  %443 = vmatprep.subr.mxu0 0.0
  %444 = vmatpush1.msra.mxu0 %v228
  %445 = vmatprep.subr.mxu0 0.0
  %446 = vmatpush1.msra.mxu0 %v229
  %447 = vmatprep.subr.mxu0 0.0
  %448 = vmatpush1.msra.mxu0 %v230
  %449 = vmatprep.subr.mxu0 0.0
  %450 = vmatpush1.msra.mxu0 %v231
  %451 = vmatprep.subr.mxu0 0.0
  %452 = vmatpush1.msra.mxu0 0.0
  %453 = vmatprep.subr.mxu0 0.0
  %454 = vmatpush1.msra.mxu0 0.0
  %455 = vmatprep.subr.mxu0 0.0
  %456 = vmatpush1.msra.mxu0 0.0
  %457 = vmatprep.subr.mxu0 0.0
  %458 = vmatpush1.msra.mxu0 0.0
  %459 = vmatprep.subr.mxu0 0.0
  %460 = vmatpush1.msra.mxu0 0.0
  %461 = vmatprep.subr.mxu0 0.0
  %462 = vmatpush1.msra.mxu0 0.0
  %463 = vmatprep.subr.mxu0 0.0
  %464 = vmatpush1.msra.mxu0 0.0
  %465 = vmatprep.subr.mxu0 0.0
  %466 = vmatpush1.msra.mxu0 0.0
  %467 = vmatprep.subr.mxu0 0.0
  %468 = vmatpush1.msra.mxu0 0.0
  %469 = vmatprep.subr.mxu0 0.0
  %470 = vmatpush1.msra.mxu0 0.0
  %471 = vmatprep.subr.mxu0 0.0
  %472 = vmatpush1.msra.mxu0 0.0
  %473 = vmatprep.subr.mxu0 0.0
  %474 = vmatpush1.msra.mxu0 0.0
  %475 = vmatprep.subr.mxu0 0.0
  %476 = vmatpush1.msra.mxu0 0.0
  %477 = vmatprep.subr.mxu0 0.0
  %478 = vmatpush1.msra.mxu0 0.0
  %479 = vmatprep.subr.mxu0 0.0
  %480 = vmatpush1.msra.mxu0 0.0
  %481 = vmatprep.subr.mxu0 0.0
  %482 = vmatpush1.msra.mxu0 0.0
  %483 = vmatprep.subr.mxu0 0.0
  %484 = vmatpush1.msra.mxu0 0.0
  %485 = vmatprep.subr.mxu0 0.0
  %486 = vmatpush1.msra.mxu0 0.0
  %487 = vmatprep.subr.mxu0 0.0
  %488 = vmatpush1.msra.mxu0 0.0
  %489 = vmatprep.subr.mxu0 0.0
  %490 = vmatpush1.msra.mxu0 0.0
  %491 = vmatprep.subr.mxu0 0.0
  %492 = vmatpush1.msra.mxu0 0.0
  %493 = vmatprep.subr.mxu0 0.0
  %494 = vmatpush1.msra.mxu0 0.0
  %495 = vmatprep.subr.mxu0 0.0
  %496 = vmatpush1.msra.mxu0 0.0
  %497 = vmatprep.subr.mxu0 0.0
  %498 = vmatpush1.msra.mxu0 0.0
  %499 = vmatprep.subr.mxu0 0.0
  %500 = vmatpush1.msra.mxu0 0.0
  %501 = vmatprep.subr.mxu0 0.0
  %502 = vmatpush1.msra.mxu0 0.0
  %503 = vmatprep.subr.mxu0 0.0
  %504 = vmatpush1.msra.mxu0 0.0
  %505 = vmatprep.subr.mxu0 0.0
  %506 = vmatpush1.msra.mxu0 0.0
  %507 = vmatprep.mubr.f32.mxu0 0.0
  %508 = vmatmul.mubr.f32.gmra.mrb[0].mxu0 %v441
  %v509 = vpop.f32.mrb[0].mxu0
  %v510 = vadd.f32 0.0, %v509
  %v511 = vpop.f32.mrb[0].mxu0
  %512 = vdwg.mxu0
  %v513 = vadd.f32 %v440, %v510
  %v514 = vxor.u32 %v513, 2147483648
  %v515 = vmul.f32 %v514, 1.442695
  %v516 = vpow.pop %v515
  %v517 = vadd.f32 %v516, 1.0
  %v518 = vrcp.pop %v517
  %v519 = vmul.f32 1.0, %v518
  %v520 = vtanh.pop %v513
  %v521 = vmul.f32 %v519, %v428
  %523 = vrot.lane.b32.xlu0 %v520, 64
  %v524 = vpop.permute.xlu0 %523
  %v526 = vmul.f32 %v519, %v524
  %528 = vrot.lane.b32.xlu0 %v526, 32
  %v529 = vpop.permute.xlu0 %528
  %v531 = vadd.f32 %v521, %v529
  %v532 = vtanh.pop %v531
  %534 = vrot.lane.b32.xlu0 %v532, 64
  %v535 = vpop.permute.xlu0 %534
  %v537 = vmul.f32 %v519, %v535
  %539 = vrot.lane.b32.xlu0 %v537, 32
  %v540 = vpop.permute.xlu0 %539
  %542 = vst.msk [vmem:[#allocation3 + $0x4] sm:$0x3] %vm335, %v540
  %v543 = vld [vmem:[#allocation2 + $0x6] sm:$0x3]
  %v544 = vsel %vm144, %v540, 0
  %546 = vmatprep.subr.mxu0 0.0
  %547 = vmatpush1.msra.mxu0 %v228
  %548 = vmatprep.subr.mxu0 0.0
  %549 = vmatpush1.msra.mxu0 %v229
  %550 = vmatprep.subr.mxu0 0.0
  %551 = vmatpush1.msra.mxu0 %v230
  %552 = vmatprep.subr.mxu0 0.0
  %553 = vmatpush1.msra.mxu0 %v231
  %554 = vmatprep.subr.mxu0 0.0
  %555 = vmatpush1.msra.mxu0 0.0
  %556 = vmatprep.subr.mxu0 0.0
  %557 = vmatpush1.msra.mxu0 0.0
  %558 = vmatprep.subr.mxu0 0.0
  %559 = vmatpush1.msra.mxu0 0.0
  %560 = vmatprep.subr.mxu0 0.0
  %561 = vmatpush1.msra.mxu0 0.0
  %562 = vmatprep.subr.mxu0 0.0
  %563 = vmatpush1.msra.mxu0 0.0
  %564 = vmatprep.subr.mxu0 0.0
  %565 = vmatpush1.msra.mxu0 0.0
  %566 = vmatprep.subr.mxu0 0.0
  %567 = vmatpush1.msra.mxu0 0.0
  %568 = vmatprep.subr.mxu0 0.0
  %569 = vmatpush1.msra.mxu0 0.0
  %570 = vmatprep.subr.mxu0 0.0
  %571 = vmatpush1.msra.mxu0 0.0
  %572 = vmatprep.subr.mxu0 0.0
  %573 = vmatpush1.msra.mxu0 0.0
  %574 = vmatprep.subr.mxu0 0.0
  %575 = vmatpush1.msra.mxu0 0.0
  %576 = vmatprep.subr.mxu0 0.0
  %577 = vmatpush1.msra.mxu0 0.0
  %578 = vmatprep.subr.mxu0 0.0
  %579 = vmatpush1.msra.mxu0 0.0
  %580 = vmatprep.subr.mxu0 0.0
  %581 = vmatpush1.msra.mxu0 0.0
  %582 = vmatprep.subr.mxu0 0.0
  %583 = vmatpush1.msra.mxu0 0.0
  %584 = vmatprep.subr.mxu0 0.0
  %585 = vmatpush1.msra.mxu0 0.0
  %586 = vmatprep.subr.mxu0 0.0
  %587 = vmatpush1.msra.mxu0 0.0
  %588 = vmatprep.subr.mxu0 0.0
  %589 = vmatpush1.msra.mxu0 0.0
  %590 = vmatprep.subr.mxu0 0.0
  %591 = vmatpush1.msra.mxu0 0.0
  %592 = vmatprep.subr.mxu0 0.0
  %593 = vmatpush1.msra.mxu0 0.0
  %594 = vmatprep.subr.mxu0 0.0
  %595 = vmatpush1.msra.mxu0 0.0
  %596 = vmatprep.subr.mxu0 0.0
  %597 = vmatpush1.msra.mxu0 0.0
  %598 = vmatprep.subr.mxu0 0.0
  %599 = vmatpush1.msra.mxu0 0.0
  %600 = vmatprep.subr.mxu0 0.0
  %601 = vmatpush1.msra.mxu0 0.0
  %602 = vmatprep.subr.mxu0 0.0
  %603 = vmatpush1.msra.mxu0 0.0
  %604 = vmatprep.subr.mxu0 0.0
  %605 = vmatpush1.msra.mxu0 0.0
  %606 = vmatprep.subr.mxu0 0.0
  %607 = vmatpush1.msra.mxu0 0.0
  %608 = vmatprep.subr.mxu0 0.0
  %609 = vmatpush1.msra.mxu0 0.0
  %610 = vmatprep.mubr.f32.mxu0 0.0
  %611 = vmatmul.mubr.f32.gmra.mrb[0].mxu0 %v544
  %v612 = vpop.f32.mrb[0].mxu0
  %v613 = vadd.f32 0.0, %v612
  %v614 = vpop.f32.mrb[0].mxu0
  %615 = vdwg.mxu0
  %v616 = vadd.f32 %v543, %v613
  %v617 = vxor.u32 %v616, 2147483648
  %v618 = vmul.f32 %v617, 1.442695
  %v619 = vpow.pop %v618
  %v620 = vadd.f32 %v619, 1.0
  %v621 = vrcp.pop %v620
  %v622 = vmul.f32 1.0, %v621
  %v623 = vtanh.pop %v616
  %v624 = vmul.f32 %v622, %v531
  %626 = vrot.lane.b32.xlu0 %v623, 64
  %v627 = vpop.permute.xlu0 %626
  %v629 = vmul.f32 %v622, %v627
  %631 = vrot.lane.b32.xlu0 %v629, 32
  %v632 = vpop.permute.xlu0 %631
  %v634 = vadd.f32 %v624, %v632
  %v635 = vtanh.pop %v634
  %637 = vrot.lane.b32.xlu0 %v635, 64
  %v638 = vpop.permute.xlu0 %637
  %v640 = vmul.f32 %v622, %v638
  %642 = vrot.lane.b32.xlu0 %v640, 32
  %v643 = vpop.permute.xlu0 %642
  %645 = vst.msk [vmem:[#allocation3 + $0x6] sm:$0x3] %vm335, %v643
  %v646 = vld [vmem:[#allocation2 + $0x8] sm:$0x3]
  %v647 = vsel %vm144, %v643, 0
  %649 = vmatprep.subr.mxu0 0.0
  %650 = vmatpush1.msra.mxu0 %v228
  %651 = vmatprep.subr.mxu0 0.0
  %652 = vmatpush1.msra.mxu0 %v229
  %653 = vmatprep.subr.mxu0 0.0
  %654 = vmatpush1.msra.mxu0 %v230
  %655 = vmatprep.subr.mxu0 0.0
  %656 = vmatpush1.msra.mxu0 %v231
  %657 = vmatprep.subr.mxu0 0.0
  %658 = vmatpush1.msra.mxu0 0.0
  %659 = vmatprep.subr.mxu0 0.0
  %660 = vmatpush1.msra.mxu0 0.0
  %661 = vmatprep.subr.mxu0 0.0
  %662 = vmatpush1.msra.mxu0 0.0
  %663 = vmatprep.subr.mxu0 0.0
  %664 = vmatpush1.msra.mxu0 0.0
  %665 = vmatprep.subr.mxu0 0.0
  %666 = vmatpush1.msra.mxu0 0.0
  %667 = vmatprep.subr.mxu0 0.0
  %668 = vmatpush1.msra.mxu0 0.0
  %669 = vmatprep.subr.mxu0 0.0
  %670 = vmatpush1.msra.mxu0 0.0
  %671 = vmatprep.subr.mxu0 0.0
  %672 = vmatpush1.msra.mxu0 0.0
  %673 = vmatprep.subr.mxu0 0.0
  %674 = vmatpush1.msra.mxu0 0.0
  %675 = vmatprep.subr.mxu0 0.0
  %676 = vmatpush1.msra.mxu0 0.0
  %677 = vmatprep.subr.mxu0 0.0
  %678 = vmatpush1.msra.mxu0 0.0
  %679 = vmatprep.subr.mxu0 0.0
  %680 = vmatpush1.msra.mxu0 0.0
  %681 = vmatprep.subr.mxu0 0.0
  %682 = vmatpush1.msra.mxu0 0.0
  %683 = vmatprep.subr.mxu0 0.0
  %684 = vmatpush1.msra.mxu0 0.0
  %685 = vmatprep.subr.mxu0 0.0
  %686 = vmatpush1.msra.mxu0 0.0
  %687 = vmatprep.subr.mxu0 0.0
  %688 = vmatpush1.msra.mxu0 0.0
  %689 = vmatprep.subr.mxu0 0.0
  %690 = vmatpush1.msra.mxu0 0.0
  %691 = vmatprep.subr.mxu0 0.0
  %692 = vmatpush1.msra.mxu0 0.0
  %693 = vmatprep.subr.mxu0 0.0
  %694 = vmatpush1.msra.mxu0 0.0
  %695 = vmatprep.subr.mxu0 0.0
  %696 = vmatpush1.msra.mxu0 0.0
  %697 = vmatprep.subr.mxu0 0.0
  %698 = vmatpush1.msra.mxu0 0.0
  %699 = vmatprep.subr.mxu0 0.0
  %700 = vmatpush1.msra.mxu0 0.0
  %701 = vmatprep.subr.mxu0 0.0
  %702 = vmatpush1.msra.mxu0 0.0
  %703 = vmatprep.subr.mxu0 0.0
  %704 = vmatpush1.msra.mxu0 0.0
  %705 = vmatprep.subr.mxu0 0.0
  %706 = vmatpush1.msra.mxu0 0.0
  %707 = vmatprep.subr.mxu0 0.0
  %708 = vmatpush1.msra.mxu0 0.0
  %709 = vmatprep.subr.mxu0 0.0
  %710 = vmatpush1.msra.mxu0 0.0
  %711 = vmatprep.subr.mxu0 0.0
  %712 = vmatpush1.msra.mxu0 0.0
  %713 = vmatprep.mubr.f32.mxu0 0.0
  %714 = vmatmul.mubr.f32.gmra.mrb[0].mxu0 %v647
  %v715 = vpop.f32.mrb[0].mxu0
  %v716 = vadd.f32 0.0, %v715
  %v717 = vpop.f32.mrb[0].mxu0
  %718 = vdwg.mxu0
  %v719 = vadd.f32 %v646, %v716
  %v720 = vxor.u32 %v719, 2147483648
  %v721 = vmul.f32 %v720, 1.442695
  %v722 = vpow.pop %v721
  %v723 = vadd.f32 %v722, 1.0
  %v724 = vrcp.pop %v723
  %v725 = vmul.f32 1.0, %v724
  %v726 = vtanh.pop %v719
  %v727 = vmul.f32 %v725, %v634
  %729 = vrot.lane.b32.xlu0 %v726, 64
  %v730 = vpop.permute.xlu0 %729
  %v732 = vmul.f32 %v725, %v730
  %734 = vrot.lane.b32.xlu0 %v732, 32
  %v735 = vpop.permute.xlu0 %734
  %v737 = vadd.f32 %v727, %v735
  %v738 = vtanh.pop %v737
  %740 = vrot.lane.b32.xlu0 %v738, 64
  %v741 = vpop.permute.xlu0 %740
  %v743 = vmul.f32 %v725, %v741
  %745 = vrot.lane.b32.xlu0 %v743, 32
  %v746 = vpop.permute.xlu0 %745
  %748 = vst.msk [vmem:[#allocation3 + $0x8] sm:$0x3] %vm335, %v746
  %v749 = vld [vmem:[#allocation2 + $0xa] sm:$0x3]
  %v750 = vsel %vm144, %v746, 0
  %752 = vmatprep.subr.mxu0 0.0
  %753 = vmatpush1.msra.mxu0 %v228
  %754 = vmatprep.subr.mxu0 0.0
  %755 = vmatpush1.msra.mxu0 %v229
  %756 = vmatprep.subr.mxu0 0.0
  %757 = vmatpush1.msra.mxu0 %v230
  %758 = vmatprep.subr.mxu0 0.0
  %759 = vmatpush1.msra.mxu0 %v231
  %760 = vmatprep.subr.mxu0 0.0
  %761 = vmatpush1.msra.mxu0 0.0
  %762 = vmatprep.subr.mxu0 0.0
  %763 = vmatpush1.msra.mxu0 0.0
  %764 = vmatprep.subr.mxu0 0.0
  %765 = vmatpush1.msra.mxu0 0.0
  %766 = vmatprep.subr.mxu0 0.0
  %767 = vmatpush1.msra.mxu0 0.0
  %768 = vmatprep.subr.mxu0 0.0
  %769 = vmatpush1.msra.mxu0 0.0
  %770 = vmatprep.subr.mxu0 0.0
  %771 = vmatpush1.msra.mxu0 0.0
  %772 = vmatprep.subr.mxu0 0.0
  %773 = vmatpush1.msra.mxu0 0.0
  %774 = vmatprep.subr.mxu0 0.0
  %775 = vmatpush1.msra.mxu0 0.0
  %776 = vmatprep.subr.mxu0 0.0
  %777 = vmatpush1.msra.mxu0 0.0
  %778 = vmatprep.subr.mxu0 0.0
  %779 = vmatpush1.msra.mxu0 0.0
  %780 = vmatprep.subr.mxu0 0.0
  %781 = vmatpush1.msra.mxu0 0.0
  %782 = vmatprep.subr.mxu0 0.0
  %783 = vmatpush1.msra.mxu0 0.0
  %784 = vmatprep.subr.mxu0 0.0
  %785 = vmatpush1.msra.mxu0 0.0
  %786 = vmatprep.subr.mxu0 0.0
  %787 = vmatpush1.msra.mxu0 0.0
  %788 = vmatprep.subr.mxu0 0.0
  %789 = vmatpush1.msra.mxu0 0.0
  %790 = vmatprep.subr.mxu0 0.0
  %791 = vmatpush1.msra.mxu0 0.0
  %792 = vmatprep.subr.mxu0 0.0
  %793 = vmatpush1.msra.mxu0 0.0
  %794 = vmatprep.subr.mxu0 0.0
  %795 = vmatpush1.msra.mxu0 0.0
  %796 = vmatprep.subr.mxu0 0.0
  %797 = vmatpush1.msra.mxu0 0.0
  %798 = vmatprep.subr.mxu0 0.0
  %799 = vmatpush1.msra.mxu0 0.0
  %800 = vmatprep.subr.mxu0 0.0
  %801 = vmatpush1.msra.mxu0 0.0
  %802 = vmatprep.subr.mxu0 0.0
  %803 = vmatpush1.msra.mxu0 0.0
  %804 = vmatprep.subr.mxu0 0.0
  %805 = vmatpush1.msra.mxu0 0.0
  %806 = vmatprep.subr.mxu0 0.0
  %807 = vmatpush1.msra.mxu0 0.0
  %808 = vmatprep.subr.mxu0 0.0
  %809 = vmatpush1.msra.mxu0 0.0
  %810 = vmatprep.subr.mxu0 0.0
  %811 = vmatpush1.msra.mxu0 0.0
  %812 = vmatprep.subr.mxu0 0.0
  %813 = vmatpush1.msra.mxu0 0.0
  %814 = vmatprep.subr.mxu0 0.0
  %815 = vmatpush1.msra.mxu0 0.0
  %816 = vmatprep.mubr.f32.mxu0 0.0
  %817 = vmatmul.mubr.f32.gmra.mrb[0].mxu0 %v750
  %v818 = vpop.f32.mrb[0].mxu0
  %v819 = vadd.f32 0.0, %v818
  %v820 = vpop.f32.mrb[0].mxu0
  %821 = vdwg.mxu0
  %v822 = vadd.f32 %v749, %v819
  %v823 = vxor.u32 %v822, 2147483648
  %v824 = vmul.f32 %v823, 1.442695
  %v825 = vpow.pop %v824
  %v826 = vadd.f32 %v825, 1.0
  %v827 = vrcp.pop %v826
  %v828 = vmul.f32 1.0, %v827
  %v829 = vtanh.pop %v822
  %v830 = vmul.f32 %v828, %v737
  %832 = vrot.lane.b32.xlu0 %v829, 64
  %v833 = vpop.permute.xlu0 %832
  %v835 = vmul.f32 %v828, %v833
  %837 = vrot.lane.b32.xlu0 %v835, 32
  %v838 = vpop.permute.xlu0 %837
  %v840 = vadd.f32 %v830, %v838
  %v841 = vtanh.pop %v840
  %843 = vrot.lane.b32.xlu0 %v841, 64
  %v844 = vpop.permute.xlu0 %843
  %v846 = vmul.f32 %v828, %v844
  %848 = vrot.lane.b32.xlu0 %v846, 32
  %v849 = vpop.permute.xlu0 %848
  %851 = vst.msk [vmem:[#allocation3 + $0xa] sm:$0x3] %vm335, %v849
  %v852 = vld [vmem:[#allocation2 + $0xc] sm:$0x3]
  %v853 = vsel %vm144, %v849, 0
  %855 = vmatprep.subr.mxu0 0.0
  %856 = vmatpush1.msra.mxu0 %v228
  %857 = vmatprep.subr.mxu0 0.0
  %858 = vmatpush1.msra.mxu0 %v229
  %859 = vmatprep.subr.mxu0 0.0
  %860 = vmatpush1.msra.mxu0 %v230
  %861 = vmatprep.subr.mxu0 0.0
  %862 = vmatpush1.msra.mxu0 %v231
  %863 = vmatprep.subr.mxu0 0.0
  %864 = vmatpush1.msra.mxu0 0.0
  %865 = vmatprep.subr.mxu0 0.0
  %866 = vmatpush1.msra.mxu0 0.0
  %867 = vmatprep.subr.mxu0 0.0
  %868 = vmatpush1.msra.mxu0 0.0
  %869 = vmatprep.subr.mxu0 0.0
  %870 = vmatpush1.msra.mxu0 0.0
  %871 = vmatprep.subr.mxu0 0.0
  %872 = vmatpush1.msra.mxu0 0.0
  %873 = vmatprep.subr.mxu0 0.0
  %874 = vmatpush1.msra.mxu0 0.0
  %875 = vmatprep.subr.mxu0 0.0
  %876 = vmatpush1.msra.mxu0 0.0
  %877 = vmatprep.subr.mxu0 0.0
  %878 = vmatpush1.msra.mxu0 0.0
  %879 = vmatprep.subr.mxu0 0.0
  %880 = vmatpush1.msra.mxu0 0.0
  %881 = vmatprep.subr.mxu0 0.0
  %882 = vmatpush1.msra.mxu0 0.0
  %883 = vmatprep.subr.mxu0 0.0
  %884 = vmatpush1.msra.mxu0 0.0
  %885 = vmatprep.subr.mxu0 0.0
  %886 = vmatpush1.msra.mxu0 0.0
  %887 = vmatprep.subr.mxu0 0.0
  %888 = vmatpush1.msra.mxu0 0.0
  %889 = vmatprep.subr.mxu0 0.0
  %890 = vmatpush1.msra.mxu0 0.0
  %891 = vmatprep.subr.mxu0 0.0
  %892 = vmatpush1.msra.mxu0 0.0
  %893 = vmatprep.subr.mxu0 0.0
  %894 = vmatpush1.msra.mxu0 0.0
  %895 = vmatprep.subr.mxu0 0.0
  %896 = vmatpush1.msra.mxu0 0.0
  %897 = vmatprep.subr.mxu0 0.0
  %898 = vmatpush1.msra.mxu0 0.0
  %899 = vmatprep.subr.mxu0 0.0
  %900 = vmatpush1.msra.mxu0 0.0
  %901 = vmatprep.subr.mxu0 0.0
  %902 = vmatpush1.msra.mxu0 0.0
  %903 = vmatprep.subr.mxu0 0.0
  %904 = vmatpush1.msra.mxu0 0.0
  %905 = vmatprep.subr.mxu0 0.0
  %906 = vmatpush1.msra.mxu0 0.0
  %907 = vmatprep.subr.mxu0 0.0
  %908 = vmatpush1.msra.mxu0 0.0
  %909 = vmatprep.subr.mxu0 0.0
  %910 = vmatpush1.msra.mxu0 0.0
  %911 = vmatprep.subr.mxu0 0.0
  %912 = vmatpush1.msra.mxu0 0.0
  %913 = vmatprep.subr.mxu0 0.0
  %914 = vmatpush1.msra.mxu0 0.0
  %915 = vmatprep.subr.mxu0 0.0
  %916 = vmatpush1.msra.mxu0 0.0
  %917 = vmatprep.subr.mxu0 0.0
  %918 = vmatpush1.msra.mxu0 0.0
  %919 = vmatprep.mubr.f32.mxu0 0.0
  %920 = vmatmul.mubr.f32.gmra.mrb[0].mxu0 %v853
  %v921 = vpop.f32.mrb[0].mxu0
  %v922 = vadd.f32 0.0, %v921
  %v923 = vpop.f32.mrb[0].mxu0
  %924 = vdwg.mxu0
  %v925 = vadd.f32 %v852, %v922
  %v926 = vxor.u32 %v925, 2147483648
  %v927 = vmul.f32 %v926, 1.442695
  %v928 = vpow.pop %v927
  %v929 = vadd.f32 %v928, 1.0
  %v930 = vrcp.pop %v929
  %v931 = vmul.f32 1.0, %v930
  %v932 = vtanh.pop %v925
  %v933 = vmul.f32 %v931, %v840
  %935 = vrot.lane.b32.xlu0 %v932, 64
  %v936 = vpop.permute.xlu0 %935
  %v938 = vmul.f32 %v931, %v936
  %940 = vrot.lane.b32.xlu0 %v938, 32
  %v941 = vpop.permute.xlu0 %940
  %v943 = vadd.f32 %v933, %v941
  %v944 = vtanh.pop %v943
  %946 = vrot.lane.b32.xlu0 %v944, 64
  %v947 = vpop.permute.xlu0 %946
  %v949 = vmul.f32 %v931, %v947
  %951 = vrot.lane.b32.xlu0 %v949, 32
  %v952 = vpop.permute.xlu0 %951
  %954 = vst.msk [vmem:[#allocation3 + $0xc] sm:$0x3] %vm335, %v952
  %v955 = vld [vmem:[#allocation2 + $0xe] sm:$0x3]
  %v956 = vsel %vm144, %v952, 0
  %958 = vmatprep.subr.mxu0 0.0
  %959 = vmatpush1.msra.mxu0 %v228
  %960 = vmatprep.subr.mxu0 0.0
  %961 = vmatpush1.msra.mxu0 %v229
  %962 = vmatprep.subr.mxu0 0.0
  %963 = vmatpush1.msra.mxu0 %v230
  %964 = vmatprep.subr.mxu0 0.0
  %965 = vmatpush1.msra.mxu0 %v231
  %966 = vmatprep.subr.mxu0 0.0
  %967 = vmatpush1.msra.mxu0 0.0
  %968 = vmatprep.subr.mxu0 0.0
  %969 = vmatpush1.msra.mxu0 0.0
  %970 = vmatprep.subr.mxu0 0.0
  %971 = vmatpush1.msra.mxu0 0.0
  %972 = vmatprep.subr.mxu0 0.0
  %973 = vmatpush1.msra.mxu0 0.0
  %974 = vmatprep.subr.mxu0 0.0
  %975 = vmatpush1.msra.mxu0 0.0
  %976 = vmatprep.subr.mxu0 0.0
  %977 = vmatpush1.msra.mxu0 0.0
  %978 = vmatprep.subr.mxu0 0.0
  %979 = vmatpush1.msra.mxu0 0.0
  %980 = vmatprep.subr.mxu0 0.0
  %981 = vmatpush1.msra.mxu0 0.0
  %982 = vmatprep.subr.mxu0 0.0
  %983 = vmatpush1.msra.mxu0 0.0
  %984 = vmatprep.subr.mxu0 0.0
  %985 = vmatpush1.msra.mxu0 0.0
  %986 = vmatprep.subr.mxu0 0.0
  %987 = vmatpush1.msra.mxu0 0.0
  %988 = vmatprep.subr.mxu0 0.0
  %989 = vmatpush1.msra.mxu0 0.0
  %990 = vmatprep.subr.mxu0 0.0
  %991 = vmatpush1.msra.mxu0 0.0
  %992 = vmatprep.subr.mxu0 0.0
  %993 = vmatpush1.msra.mxu0 0.0
  %994 = vmatprep.subr.mxu0 0.0
  %995 = vmatpush1.msra.mxu0 0.0
  %996 = vmatprep.subr.mxu0 0.0
  %997 = vmatpush1.msra.mxu0 0.0
  %998 = vmatprep.subr.mxu0 0.0
  %999 = vmatpush1.msra.mxu0 0.0
  %1000 = vmatprep.subr.mxu0 0.0
  %1001 = vmatpush1.msra.mxu0 0.0
  %1002 = vmatprep.subr.mxu0 0.0
  %1003 = vmatpush1.msra.mxu0 0.0
  %1004 = vmatprep.subr.mxu0 0.0
  %1005 = vmatpush1.msra.mxu0 0.0
  %1006 = vmatprep.subr.mxu0 0.0
  %1007 = vmatpush1.msra.mxu0 0.0
  %1008 = vmatprep.subr.mxu0 0.0
  %1009 = vmatpush1.msra.mxu0 0.0
  %1010 = vmatprep.subr.mxu0 0.0
  %1011 = vmatpush1.msra.mxu0 0.0
  %1012 = vmatprep.subr.mxu0 0.0
  %1013 = vmatpush1.msra.mxu0 0.0
  %1014 = vmatprep.subr.mxu0 0.0
  %1015 = vmatpush1.msra.mxu0 0.0
  %1016 = vmatprep.subr.mxu0 0.0
  %1017 = vmatpush1.msra.mxu0 0.0
  %1018 = vmatprep.subr.mxu0 0.0
  %1019 = vmatpush1.msra.mxu0 0.0
  %1020 = vmatprep.subr.mxu0 0.0
  %1021 = vmatpush1.msra.mxu0 0.0
  %1022 = vmatprep.mubr.f32.mxu0 0.0
  %1023 = vmatmul.mubr.f32.gmra.mrb[0].mxu0 %v956
  %v1024 = vpop.f32.mrb[0].mxu0
  %v1025 = vadd.f32 0.0, %v1024
  %v1026 = vpop.f32.mrb[0].mxu0
  %1027 = vdwg.mxu0
  %v1028 = vadd.f32 %v955, %v1025
  %v1029 = vxor.u32 %v1028, 2147483648
  %v1030 = vmul.f32 %v1029, 1.442695
  %v1031 = vpow.pop %v1030
  %v1032 = vadd.f32 %v1031, 1.0
  %v1033 = vrcp.pop %v1032
  %v1034 = vmul.f32 1.0, %v1033
  %v1035 = vtanh.pop %v1028
  %v1036 = vmul.f32 %v1034, %v943
  %1038 = vrot.lane.b32.xlu0 %v1035, 64
  %v1039 = vpop.permute.xlu0 %1038
  %v1041 = vmul.f32 %v1034, %v1039
  %1043 = vrot.lane.b32.xlu0 %v1041, 32
  %v1044 = vpop.permute.xlu0 %1043
  %v1046 = vadd.f32 %v1036, %v1044
  %v1047 = vtanh.pop %v1046
  %1049 = vrot.lane.b32.xlu0 %v1047, 64
  %v1050 = vpop.permute.xlu0 %1049
  %v1052 = vmul.f32 %v1034, %v1050
  %1054 = vrot.lane.b32.xlu0 %v1052, 32
  %v1055 = vpop.permute.xlu0 %1054
  %1057 = vst.msk [vmem:[#allocation3 + $0xe] sm:$0x3] %vm335, %v1055
  %v1058 = vld [vmem:[#allocation3] sm:$0xff]
  %v1059 = vld [vmem:[#allocation3 + $0x8] sm:$0xff]
  %v1060 = vld [vmem:[%s5] sm:$0xff]
  %v1061 = vld [vmem:[%s5 + $0x8] sm:$0xff]
  %v1062 = vld [vmem:[%s5 + $0x10] sm:$0xff]
  %v1063 = vld [vmem:[%s5 + $0x18] sm:$0xff]
  %v1064 = vld [vmem:[%s6] sm:$0x1]
  %v1066 = vlaneseq
  %v1067 = vshrl.u32 %v1066, 7
  %v1068 = vsub.s32 0, %v1067
  %v1069 = vrot.slane %v1064, %v1068
  %v1072 = vsel %vm144, %v1058, 0
  %v1075 = vsel %vm144, %v1059, 0
  %1077 = vmatprep.subr.mxu0 0.0
  %1078 = vmatpush1.msra.mxu0 %v1060
  %1079 = vmatprep.subr.mxu0 0.0
  %1080 = vmatpush1.msra.mxu0 %v1061
  %1081 = vmatprep.subr.mxu0 0.0
  %1082 = vmatpush1.msra.mxu0 %v1062
  %1083 = vmatprep.subr.mxu0 0.0
  %1084 = vmatpush1.msra.mxu0 %v1063
  %1085 = vmatprep.subr.mxu0 0.0
  %1086 = vmatpush1.msra.mxu0 0.0
  %1087 = vmatprep.subr.mxu0 0.0
  %1088 = vmatpush1.msra.mxu0 0.0
  %1089 = vmatprep.subr.mxu0 0.0
  %1090 = vmatpush1.msra.mxu0 0.0
  %1091 = vmatprep.subr.mxu0 0.0
  %1092 = vmatpush1.msra.mxu0 0.0
  %1093 = vmatprep.subr.mxu0 0.0
  %1094 = vmatpush1.msra.mxu0 0.0
  %1095 = vmatprep.subr.mxu0 0.0
  %1096 = vmatpush1.msra.mxu0 0.0
  %1097 = vmatprep.subr.mxu0 0.0
  %1098 = vmatpush1.msra.mxu0 0.0
  %1099 = vmatprep.subr.mxu0 0.0
  %1100 = vmatpush1.msra.mxu0 0.0
  %1101 = vmatprep.subr.mxu0 0.0
  %1102 = vmatpush1.msra.mxu0 0.0
  %1103 = vmatprep.subr.mxu0 0.0
  %1104 = vmatpush1.msra.mxu0 0.0
  %1105 = vmatprep.subr.mxu0 0.0
  %1106 = vmatpush1.msra.mxu0 0.0
  %1107 = vmatprep.subr.mxu0 0.0
  %1108 = vmatpush1.msra.mxu0 0.0
  %1109 = vmatprep.subr.mxu0 0.0
  %1110 = vmatpush1.msra.mxu0 0.0
  %1111 = vmatprep.subr.mxu0 0.0
  %1112 = vmatpush1.msra.mxu0 0.0
  %1113 = vmatprep.subr.mxu0 0.0
  %1114 = vmatpush1.msra.mxu0 0.0
  %1115 = vmatprep.subr.mxu0 0.0
  %1116 = vmatpush1.msra.mxu0 0.0
  %1117 = vmatprep.subr.mxu0 0.0
  %1118 = vmatpush1.msra.mxu0 0.0
  %1119 = vmatprep.subr.mxu0 0.0
  %1120 = vmatpush1.msra.mxu0 0.0
  %1121 = vmatprep.subr.mxu0 0.0
  %1122 = vmatpush1.msra.mxu0 0.0
  %1123 = vmatprep.subr.mxu0 0.0
  %1124 = vmatpush1.msra.mxu0 0.0
  %1125 = vmatprep.subr.mxu0 0.0
  %1126 = vmatpush1.msra.mxu0 0.0
  %1127 = vmatprep.subr.mxu0 0.0
  %1128 = vmatpush1.msra.mxu0 0.0
  %1129 = vmatprep.subr.mxu0 0.0
  %1130 = vmatpush1.msra.mxu0 0.0
  %1131 = vmatprep.subr.mxu0 0.0
  %1132 = vmatpush1.msra.mxu0 0.0
  %1133 = vmatprep.subr.mxu0 0.0
  %1134 = vmatpush1.msra.mxu0 0.0
  %1135 = vmatprep.subr.mxu0 0.0
  %1136 = vmatpush1.msra.mxu0 0.0
  %1137 = vmatprep.subr.mxu0 0.0
  %1138 = vmatpush1.msra.mxu0 0.0
  %1139 = vmatprep.subr.mxu0 0.0
  %1140 = vmatpush1.msra.mxu0 0.0
  %1141 = vmatprep.mubr.f32.mxu0 0.0
  %1142 = vmatmul.mubr.f32.gmra.mrb[0].mxu0 %v1072
  %v1143 = vpop.f32.mrb[0].mxu0
  %v1144 = vadd.f32 %v1069, %v1143
  %v1145 = vpop.f32.mrb[0].mxu0
  %1146 = vmatprep.mubr.f32.mxu0 0.0
  %1147 = vmatmul.mubr.f32.gmra.mrb[0].mxu0 %v1075
  %v1148 = vpop.f32.mrb[0].mxu0
  %v1149 = vadd.f32 %v1069, %v1148
  %v1150 = vpop.f32.mrb[0].mxu0
  %1151 = vdwg.mxu0
  %vm1152 = vcmask 64512
  %1153 = vst.msk [vmem:[%s7] sm:$0xff] %vm1152, %v1144
  %1154 = vst.msk [vmem:[%s7 + $0x8] sm:$0xff] %vm1152, %v1149
  // Predicated region
  $region30: #{tpu_custom_call.1} parent=0 // pred_check
    _
  $region31: #{tpu_custom_call.1} parent=0 // pred_check_branch
    %1156 = sbr.rel (0) target = $region33
  $region32: #{tpu_custom_call.1} parent=0 // pred_region
    _
  $region33: #{tpu_custom_call.1} parent=0 // pred_fallthru
    _
  // Predicated region
  $region34: #{tpu_custom_call.1} parent=0 // pred_check
    _
  $region35: #{tpu_custom_call.1} parent=0 // pred_check_branch
    %1158 = sbr.rel (0) target = $region37
  $region36: #{tpu_custom_call.1} parent=0 // pred_region
    _
  $region37: #{tpu_custom_call.1} parent=0 // pred_fallthru
    _

</llo_original>
